<compile_context>
chip_gen: v7x
topology: tpu7x:2x2x1
jax: 0.10.0
libtpu: 0.0.40
codegen_flags: <defaults>
</compile_context>

<pallas_src>
import jax
import jax.numpy as jnp
from jax.experimental import pallas as pl
from jax.experimental.pallas import tpu as pltpu


def _downsample_kernel(x_ref, w_ref, o_ref):
    """Fused conv3x3 (no bias) + PixelUnshuffle(2) for one batch element.

    x_ref : (4, Hp, Wp, Cin)  bf16  4 spatial phases of the zero-padded input;
                                    phase p*2+q holds x_pad[2h+p, 2w+q, :]
    w_ref : (16, Cin, Ko)     bf16  Ko = 4*Cout; block (p,q,a,b) flattened as
                                    ((p*2+q)*2 + a)*2 + b
    o_ref : (1, H2*W2, Ko)    f32   lane-dense output, channel k = c*4 + i*2 + j
    """
    _, hp, wp, cin = x_ref.shape
    h2, w2 = hp - 1, wp - 1
    m, ko = o_ref.shape[1], o_ref.shape[2]

    acc = jnp.zeros((m, ko), jnp.float32)
    for ph in range(4):                      # spatial phase (p, q) of x_pad
        # Load once per phase; do the slice/reshape relayouts in f32 (the most
        # relayout-friendly layout), cast to bf16 right before feeding the MXU.
        xph = x_ref[ph].astype(jnp.float32)  # (Hp, Wp, Cin)
        for a in (0, 1):                     # row-block offset in the 4x4 window
            for b in (0, 1):                 # col-block offset
                xt = xph[a:a + h2, b:b + w2, :].reshape(m, cin)
                acc = acc + jnp.dot(
                    xt.astype(jnp.bfloat16),
                    w_ref[(ph * 2 + a) * 2 + b],
                    preferred_element_type=jnp.float32)
    o_ref[0] = acc.astype(o_ref.dtype)


def downsample(x_nchw, w_hwio):
    """Downsample.forward: conv3x3(stride1, pad1, no bias) -> PixelUnshuffle(2).

    x_nchw : (B, Cin, H, W) float32, H and W even
    w_hwio : (3, 3, Cin, Cout) float32, Cout = Cin // 2
    returns: (B, 4*Cout, H//2, W//2) float32 (== (B, 2*Cin, H//2, W//2))
    """
    B, Cin, H, W = x_nchw.shape
    Cout = w_hwio.shape[-1]
    H2, W2 = H // 2, W // 2
    Hp, Wp = H2 + 1, W2 + 1
    Ko = 4 * Cout

    # ---- glue: NCHW -> NHWC, pad by 1, split padded input into 4 phases -----
    x = jnp.transpose(x_nchw, (0, 2, 3, 1))                    # (B, H, W, Cin)
    xp = jnp.pad(x, ((0, 0), (1, 1), (1, 1), (0, 0)))          # (B, H+2, W+2, Cin)
    # phases[b, p*2+q, h, w, :] = xp[b, 2h+p, 2w+q, :]
    phases = jnp.stack(
        [xp[:, p::2, q::2, :] for p in (0, 1) for q in (0, 1)], axis=1)
    phases = phases.reshape(B * 4, Hp, Wp, Cin).astype(jnp.bfloat16)

    # ---- glue: fold conv weight + pixel-unshuffle into (16, Cin, 4*Cout) ----
    # Wbig[(p,q,a,b), cin, c*4+i*2+j] = w[2a+p-i, 2b+q-j, cin, c]
    # (zero when the 3x3 tap index falls outside [0, 2]).
    w_pad = jnp.pad(w_hwio, ((1, 1), (1, 1), (0, 0), (0, 0)))  # (5, 5, Cin, Cout)
    blocks = []
    for p in (0, 1):
        for q in (0, 1):
            for a in (0, 1):
                for b in (0, 1):
                    blk = jnp.stack(
                        [jnp.stack([w_pad[2 * a + p - i + 1, 2 * b + q - j + 1]
                                    for j in (0, 1)], axis=-1)
                         for i in (0, 1)], axis=-2)            # (Cin, Cout, 2, 2)
                    blocks.append(blk.reshape(Cin, Ko))        # k = c*4 + i*2 + j
    wbig = jnp.stack(blocks, axis=0).astype(jnp.bfloat16)      # (16, Cin, Ko)

    out = pl.pallas_call(
        _downsample_kernel,
        out_shape=jax.ShapeDtypeStruct((B, H2 * W2, Ko), jnp.float32),
        grid=(B,),
        in_specs=[
            pl.BlockSpec((4, Hp, Wp, Cin), lambda bi: (bi, 0, 0, 0)),
            pl.BlockSpec((16, Cin, Ko), lambda bi: (0, 0, 0)),
        ],
        out_specs=pl.BlockSpec((1, H2 * W2, Ko), lambda bi: (bi, 0, 0)),
        compiler_params=pltpu.CompilerParams(
            dimension_semantics=("parallel",),
            vmem_limit_bytes=32 * 1024 * 1024),
    )(phases, wbig)

    out = out.reshape(B, H2, W2, Ko)                           # NHWC
    return jnp.transpose(out, (0, 3, 1, 2))                    # NCHW


def downsample_ref(x_nchw, w_hwio):
    """Pure-JAX reference: conv3x3 (bf16 operands, f32 acc) + PixelUnshuffle(2)."""
    y = jax.lax.conv_general_dilated(
        x_nchw.astype(jnp.bfloat16), w_hwio.astype(jnp.bfloat16),
        window_strides=(1, 1), padding=((1, 1), (1, 1)),
        dimension_numbers=("NCHW", "HWIO", "NCHW"),
        preferred_element_type=jnp.float32)
    B, C, H, W = y.shape
    y = y.reshape(B, C, H // 2, 2, W // 2, 2)
    y = jnp.transpose(y, (0, 1, 3, 5, 2, 4))
    return y.reshape(B, C * 4, H // 2, W // 2)


if __name__ == "__main__":
    B, N_FEAT, H, W = 2, 64, 16, 16

    key = jax.random.PRNGKey(0)
    kx, kw = jax.random.split(key)
    x = jax.random.normal(kx, (B, N_FEAT, H, W), jnp.float32)          # NCHW
    w = jax.random.normal(kw, (3, 3, N_FEAT, N_FEAT // 2), jnp.float32)
    w = w * (1.0 / jnp.sqrt(9.0 * N_FEAT))

    fwd = jax.jit(downsample)
    out = jax.block_until_ready(fwd(x, w))

    assert out.shape == (B, 2 * N_FEAT, H // 2, W // 2), out.shape
    assert bool(jnp.all(jnp.isfinite(out)))

    ref = downsample_ref(x, w)
    max_err = float(jnp.max(jnp.abs(out - ref)))
    assert max_err < 5e-2, f"max abs err vs reference: {max_err}"

    print("KERNEL_OK")
</pallas_src>

<mosaic_0001>
module attributes {stable_mosaic.version = 11 : i64} {
  func.func @_downsample_kernel(%arg0: i32, %arg1: memref<4x9x9x64xbf16, #tpu.memory_space<vmem>>, %arg2: memref<16x64x128xbf16, #tpu.memory_space<vmem>>, %arg3: memref<1x64x128xf32, #tpu.memory_space<vmem>>) attributes {dimension_semantics = [#tpu.dimension_semantics<parallel>], iteration_bounds = array<i64: 2>, scalar_prefetch = 0 : i64, scratch_operands = 0 : i64, tpu.core_type = #tpu.core_type<tc>, window_params = [{transform_indices = @transform_0, window_bounds = array<i64: 4, 9, 9, 64>}, {pipeline_mode = #tpu.pipeline_mode<synchronous>, transform_indices = @transform_1, window_bounds = array<i64: 16, 64, 128>}, {transform_indices = @transform_2, window_bounds = array<i64: 1, 64, 128>}]} {
    %cst = arith.constant 0.000000e+00 : f32
    %0 = vector.broadcast %cst : f32 to vector<64x128xf32>
    %c0 = arith.constant 0 : index
    %c0_0 = arith.constant 0 : index
    %c0_1 = arith.constant 0 : index
    %c0_2 = arith.constant 0 : index
    %1 = vector.load %arg1[%c0, %c0_0, %c0_1, %c0_2] : memref<4x9x9x64xbf16, #tpu.memory_space<vmem>>, vector<1x9x9x64xbf16>
    %2 = vector.shape_cast %1 : vector<1x9x9x64xbf16> to vector<9x9x64xbf16>
    %3 = arith.extf %2 : vector<9x9x64xbf16> to vector<9x9x64xf32>
    %4 = vector.extract_strided_slice %3 {offsets = [0, 0, 0], sizes = [8, 8, 64], strides = [1, 1, 1]} : vector<9x9x64xf32> to vector<8x8x64xf32>
    %5 = vector.shape_cast %4 : vector<8x8x64xf32> to vector<64x64xf32>
    %6 = arith.truncf %5 : vector<64x64xf32> to vector<64x64xbf16>
    %c0_3 = arith.constant 0 : index
    %c0_4 = arith.constant 0 : index
    %c0_5 = arith.constant 0 : index
    %7 = vector.load %arg2[%c0_3, %c0_4, %c0_5] : memref<16x64x128xbf16, #tpu.memory_space<vmem>>, vector<1x64x128xbf16>
    %8 = vector.shape_cast %7 : vector<1x64x128xbf16> to vector<64x128xbf16>
    %cst_6 = arith.constant dense<0.000000e+00> : vector<64x128xf32>
    %9 = tpu.matmul %6, %8, %cst_6 {dimension_numbers = #tpu.dot_dimension_numbers<[1], [0], [0], [1], [0, 0, 1, 1], [], []>} : vector<64x64xbf16>, vector<64x128xbf16>, vector<64x128xf32> -> vector<64x128xf32>
    %10 = arith.addf %0, %9 : vector<64x128xf32>
    %11 = vector.extract_strided_slice %3 {offsets = [0, 1, 0], sizes = [8, 8, 64], strides = [1, 1, 1]} : vector<9x9x64xf32> to vector<8x8x64xf32>
    %12 = vector.shape_cast %11 : vector<8x8x64xf32> to vector<64x64xf32>
    %13 = arith.truncf %12 : vector<64x64xf32> to vector<64x64xbf16>
    %c1 = arith.constant 1 : index
    %c0_7 = arith.constant 0 : index
    %c0_8 = arith.constant 0 : index
    %14 = vector.load %arg2[%c1, %c0_7, %c0_8] : memref<16x64x128xbf16, #tpu.memory_space<vmem>>, vector<1x64x128xbf16>
    %15 = vector.shape_cast %14 : vector<1x64x128xbf16> to vector<64x128xbf16>
    %cst_9 = arith.constant dense<0.000000e+00> : vector<64x128xf32>
    %16 = tpu.matmul %13, %15, %cst_9 {dimension_numbers = #tpu.dot_dimension_numbers<[1], [0], [0], [1], [0, 0, 1, 1], [], []>} : vector<64x64xbf16>, vector<64x128xbf16>, vector<64x128xf32> -> vector<64x128xf32>
    %17 = arith.addf %10, %16 : vector<64x128xf32>
    %18 = vector.extract_strided_slice %3 {offsets = [1, 0, 0], sizes = [8, 8, 64], strides = [1, 1, 1]} : vector<9x9x64xf32> to vector<8x8x64xf32>
    %19 = vector.shape_cast %18 : vector<8x8x64xf32> to vector<64x64xf32>
    %20 = arith.truncf %19 : vector<64x64xf32> to vector<64x64xbf16>
    %c2 = arith.constant 2 : index
    %c0_10 = arith.constant 0 : index
    %c0_11 = arith.constant 0 : index
    %21 = vector.load %arg2[%c2, %c0_10, %c0_11] : memref<16x64x128xbf16, #tpu.memory_space<vmem>>, vector<1x64x128xbf16>
    %22 = vector.shape_cast %21 : vector<1x64x128xbf16> to vector<64x128xbf16>
    %cst_12 = arith.constant dense<0.000000e+00> : vector<64x128xf32>
    %23 = tpu.matmul %20, %22, %cst_12 {dimension_numbers = #tpu.dot_dimension_numbers<[1], [0], [0], [1], [0, 0, 1, 1], [], []>} : vector<64x64xbf16>, vector<64x128xbf16>, vector<64x128xf32> -> vector<64x128xf32>
    %24 = arith.addf %17, %23 : vector<64x128xf32>
    %25 = vector.extract_strided_slice %3 {offsets = [1, 1, 0], sizes = [8, 8, 64], strides = [1, 1, 1]} : vector<9x9x64xf32> to vector<8x8x64xf32>
    %26 = vector.shape_cast %25 : vector<8x8x64xf32> to vector<64x64xf32>
    %27 = arith.truncf %26 : vector<64x64xf32> to vector<64x64xbf16>
    %c3 = arith.constant 3 : index
    %c0_13 = arith.constant 0 : index
    %c0_14 = arith.constant 0 : index
    %28 = vector.load %arg2[%c3, %c0_13, %c0_14] : memref<16x64x128xbf16, #tpu.memory_space<vmem>>, vector<1x64x128xbf16>
    %29 = vector.shape_cast %28 : vector<1x64x128xbf16> to vector<64x128xbf16>
    %cst_15 = arith.constant dense<0.000000e+00> : vector<64x128xf32>
    %30 = tpu.matmul %27, %29, %cst_15 {dimension_numbers = #tpu.dot_dimension_numbers<[1], [0], [0], [1], [0, 0, 1, 1], [], []>} : vector<64x64xbf16>, vector<64x128xbf16>, vector<64x128xf32> -> vector<64x128xf32>
    %31 = arith.addf %24, %30 : vector<64x128xf32>
    %c1_16 = arith.constant 1 : index
    %c0_17 = arith.constant 0 : index
    %c0_18 = arith.constant 0 : index
    %c0_19 = arith.constant 0 : index
    %32 = vector.load %arg1[%c1_16, %c0_17, %c0_18, %c0_19] : memref<4x9x9x64xbf16, #tpu.memory_space<vmem>>, vector<1x9x9x64xbf16>
    %33 = vector.shape_cast %32 : vector<1x9x9x64xbf16> to vector<9x9x64xbf16>
    %34 = arith.extf %33 : vector<9x9x64xbf16> to vector<9x9x64xf32>
    %35 = vector.extract_strided_slice %34 {offsets = [0, 0, 0], sizes = [8, 8, 64], strides = [1, 1, 1]} : vector<9x9x64xf32> to vector<8x8x64xf32>
    %36 = vector.shape_cast %35 : vector<8x8x64xf32> to vector<64x64xf32>
    %37 = arith.truncf %36 : vector<64x64xf32> to vector<64x64xbf16>
    %c4 = arith.constant 4 : index
    %c0_20 = arith.constant 0 : index
    %c0_21 = arith.constant 0 : index
    %38 = vector.load %arg2[%c4, %c0_20, %c0_21] : memref<16x64x128xbf16, #tpu.memory_space<vmem>>, vector<1x64x128xbf16>
    %39 = vector.shape_cast %38 : vector<1x64x128xbf16> to vector<64x128xbf16>
    %cst_22 = arith.constant dense<0.000000e+00> : vector<64x128xf32>
    %40 = tpu.matmul %37, %39, %cst_22 {dimension_numbers = #tpu.dot_dimension_numbers<[1], [0], [0], [1], [0, 0, 1, 1], [], []>} : vector<64x64xbf16>, vector<64x128xbf16>, vector<64x128xf32> -> vector<64x128xf32>
    %41 = arith.addf %31, %40 : vector<64x128xf32>
    %42 = vector.extract_strided_slice %34 {offsets = [0, 1, 0], sizes = [8, 8, 64], strides = [1, 1, 1]} : vector<9x9x64xf32> to vector<8x8x64xf32>
    %43 = vector.shape_cast %42 : vector<8x8x64xf32> to vector<64x64xf32>
    %44 = arith.truncf %43 : vector<64x64xf32> to vector<64x64xbf16>
    %c5 = arith.constant 5 : index
    %c0_23 = arith.constant 0 : index
    %c0_24 = arith.constant 0 : index
    %45 = vector.load %arg2[%c5, %c0_23, %c0_24] : memref<16x64x128xbf16, #tpu.memory_space<vmem>>, vector<1x64x128xbf16>
    %46 = vector.shape_cast %45 : vector<1x64x128xbf16> to vector<64x128xbf16>
    %cst_25 = arith.constant dense<0.000000e+00> : vector<64x128xf32>
    %47 = tpu.matmul %44, %46, %cst_25 {dimension_numbers = #tpu.dot_dimension_numbers<[1], [0], [0], [1], [0, 0, 1, 1], [], []>} : vector<64x64xbf16>, vector<64x128xbf16>, vector<64x128xf32> -> vector<64x128xf32>
    %48 = arith.addf %41, %47 : vector<64x128xf32>
    %49 = vector.extract_strided_slice %34 {offsets = [1, 0, 0], sizes = [8, 8, 64], strides = [1, 1, 1]} : vector<9x9x64xf32> to vector<8x8x64xf32>
    %50 = vector.shape_cast %49 : vector<8x8x64xf32> to vector<64x64xf32>
    %51 = arith.truncf %50 : vector<64x64xf32> to vector<64x64xbf16>
    %c6 = arith.constant 6 : index
    %c0_26 = arith.constant 0 : index
    %c0_27 = arith.constant 0 : index
    %52 = vector.load %arg2[%c6, %c0_26, %c0_27] : memref<16x64x128xbf16, #tpu.memory_space<vmem>>, vector<1x64x128xbf16>
    %53 = vector.shape_cast %52 : vector<1x64x128xbf16> to vector<64x128xbf16>
    %cst_28 = arith.constant dense<0.000000e+00> : vector<64x128xf32>
    %54 = tpu.matmul %51, %53, %cst_28 {dimension_numbers = #tpu.dot_dimension_numbers<[1], [0], [0], [1], [0, 0, 1, 1], [], []>} : vector<64x64xbf16>, vector<64x128xbf16>, vector<64x128xf32> -> vector<64x128xf32>
    %55 = arith.addf %48, %54 : vector<64x128xf32>
    %56 = vector.extract_strided_slice %34 {offsets = [1, 1, 0], sizes = [8, 8, 64], strides = [1, 1, 1]} : vector<9x9x64xf32> to vector<8x8x64xf32>
    %57 = vector.shape_cast %56 : vector<8x8x64xf32> to vector<64x64xf32>
    %58 = arith.truncf %57 : vector<64x64xf32> to vector<64x64xbf16>
    %c7 = arith.constant 7 : index
    %c0_29 = arith.constant 0 : index
    %c0_30 = arith.constant 0 : index
    %59 = vector.load %arg2[%c7, %c0_29, %c0_30] : memref<16x64x128xbf16, #tpu.memory_space<vmem>>, vector<1x64x128xbf16>
    %60 = vector.shape_cast %59 : vector<1x64x128xbf16> to vector<64x128xbf16>
    %cst_31 = arith.constant dense<0.000000e+00> : vector<64x128xf32>
    %61 = tpu.matmul %58, %60, %cst_31 {dimension_numbers = #tpu.dot_dimension_numbers<[1], [0], [0], [1], [0, 0, 1, 1], [], []>} : vector<64x64xbf16>, vector<64x128xbf16>, vector<64x128xf32> -> vector<64x128xf32>
    %62 = arith.addf %55, %61 : vector<64x128xf32>
    %c2_32 = arith.constant 2 : index
    %c0_33 = arith.constant 0 : index
    %c0_34 = arith.constant 0 : index
    %c0_35 = arith.constant 0 : index
    %63 = vector.load %arg1[%c2_32, %c0_33, %c0_34, %c0_35] : memref<4x9x9x64xbf16, #tpu.memory_space<vmem>>, vector<1x9x9x64xbf16>
    %64 = vector.shape_cast %63 : vector<1x9x9x64xbf16> to vector<9x9x64xbf16>
    %65 = arith.extf %64 : vector<9x9x64xbf16> to vector<9x9x64xf32>
    %66 = vector.extract_strided_slice %65 {offsets = [0, 0, 0], sizes = [8, 8, 64], strides = [1, 1, 1]} : vector<9x9x64xf32> to vector<8x8x64xf32>
    %67 = vector.shape_cast %66 : vector<8x8x64xf32> to vector<64x64xf32>
    %68 = arith.truncf %67 : vector<64x64xf32> to vector<64x64xbf16>
    %c8 = arith.constant 8 : index
    %c0_36 = arith.constant 0 : index
    %c0_37 = arith.constant 0 : index
    %69 = vector.load %arg2[%c8, %c0_36, %c0_37] : memref<16x64x128xbf16, #tpu.memory_space<vmem>>, vector<1x64x128xbf16>
    %70 = vector.shape_cast %69 : vector<1x64x128xbf16> to vector<64x128xbf16>
    %cst_38 = arith.constant dense<0.000000e+00> : vector<64x128xf32>
    %71 = tpu.matmul %68, %70, %cst_38 {dimension_numbers = #tpu.dot_dimension_numbers<[1], [0], [0], [1], [0, 0, 1, 1], [], []>} : vector<64x64xbf16>, vector<64x128xbf16>, vector<64x128xf32> -> vector<64x128xf32>
    %72 = arith.addf %62, %71 : vector<64x128xf32>
    %73 = vector.extract_strided_slice %65 {offsets = [0, 1, 0], sizes = [8, 8, 64], strides = [1, 1, 1]} : vector<9x9x64xf32> to vector<8x8x64xf32>
    %74 = vector.shape_cast %73 : vector<8x8x64xf32> to vector<64x64xf32>
    %75 = arith.truncf %74 : vector<64x64xf32> to vector<64x64xbf16>
    %c9 = arith.constant 9 : index
    %c0_39 = arith.constant 0 : index
    %c0_40 = arith.constant 0 : index
    %76 = vector.load %arg2[%c9, %c0_39, %c0_40] : memref<16x64x128xbf16, #tpu.memory_space<vmem>>, vector<1x64x128xbf16>
    %77 = vector.shape_cast %76 : vector<1x64x128xbf16> to vector<64x128xbf16>
    %cst_41 = arith.constant dense<0.000000e+00> : vector<64x128xf32>
    %78 = tpu.matmul %75, %77, %cst_41 {dimension_numbers = #tpu.dot_dimension_numbers<[1], [0], [0], [1], [0, 0, 1, 1], [], []>} : vector<64x64xbf16>, vector<64x128xbf16>, vector<64x128xf32> -> vector<64x128xf32>
    %79 = arith.addf %72, %78 : vector<64x128xf32>
    %80 = vector.extract_strided_slice %65 {offsets = [1, 0, 0], sizes = [8, 8, 64], strides = [1, 1, 1]} : vector<9x9x64xf32> to vector<8x8x64xf32>
    %81 = vector.shape_cast %80 : vector<8x8x64xf32> to vector<64x64xf32>
    %82 = arith.truncf %81 : vector<64x64xf32> to vector<64x64xbf16>
    %c10 = arith.constant 10 : index
    %c0_42 = arith.constant 0 : index
    %c0_43 = arith.constant 0 : index
    %83 = vector.load %arg2[%c10, %c0_42, %c0_43] : memref<16x64x128xbf16, #tpu.memory_space<vmem>>, vector<1x64x128xbf16>
    %84 = vector.shape_cast %83 : vector<1x64x128xbf16> to vector<64x128xbf16>
    %cst_44 = arith.constant dense<0.000000e+00> : vector<64x128xf32>
    %85 = tpu.matmul %82, %84, %cst_44 {dimension_numbers = #tpu.dot_dimension_numbers<[1], [0], [0], [1], [0, 0, 1, 1], [], []>} : vector<64x64xbf16>, vector<64x128xbf16>, vector<64x128xf32> -> vector<64x128xf32>
    %86 = arith.addf %79, %85 : vector<64x128xf32>
    %87 = vector.extract_strided_slice %65 {offsets = [1, 1, 0], sizes = [8, 8, 64], strides = [1, 1, 1]} : vector<9x9x64xf32> to vector<8x8x64xf32>
    %88 = vector.shape_cast %87 : vector<8x8x64xf32> to vector<64x64xf32>
    %89 = arith.truncf %88 : vector<64x64xf32> to vector<64x64xbf16>
    %c11 = arith.constant 11 : index
    %c0_45 = arith.constant 0 : index
    %c0_46 = arith.constant 0 : index
    %90 = vector.load %arg2[%c11, %c0_45, %c0_46] : memref<16x64x128xbf16, #tpu.memory_space<vmem>>, vector<1x64x128xbf16>
    %91 = vector.shape_cast %90 : vector<1x64x128xbf16> to vector<64x128xbf16>
    %cst_47 = arith.constant dense<0.000000e+00> : vector<64x128xf32>
    %92 = tpu.matmul %89, %91, %cst_47 {dimension_numbers = #tpu.dot_dimension_numbers<[1], [0], [0], [1], [0, 0, 1, 1], [], []>} : vector<64x64xbf16>, vector<64x128xbf16>, vector<64x128xf32> -> vector<64x128xf32>
    %93 = arith.addf %86, %92 : vector<64x128xf32>
    %c3_48 = arith.constant 3 : index
    %c0_49 = arith.constant 0 : index
    %c0_50 = arith.constant 0 : index
    %c0_51 = arith.constant 0 : index
    %94 = vector.load %arg1[%c3_48, %c0_49, %c0_50, %c0_51] : memref<4x9x9x64xbf16, #tpu.memory_space<vmem>>, vector<1x9x9x64xbf16>
    %95 = vector.shape_cast %94 : vector<1x9x9x64xbf16> to vector<9x9x64xbf16>
    %96 = arith.extf %95 : vector<9x9x64xbf16> to vector<9x9x64xf32>
    %97 = vector.extract_strided_slice %96 {offsets = [0, 0, 0], sizes = [8, 8, 64], strides = [1, 1, 1]} : vector<9x9x64xf32> to vector<8x8x64xf32>
    %98 = vector.shape_cast %97 : vector<8x8x64xf32> to vector<64x64xf32>
    %99 = arith.truncf %98 : vector<64x64xf32> to vector<64x64xbf16>
    %c12 = arith.constant 12 : index
    %c0_52 = arith.constant 0 : index
    %c0_53 = arith.constant 0 : index
    %100 = vector.load %arg2[%c12, %c0_52, %c0_53] : memref<16x64x128xbf16, #tpu.memory_space<vmem>>, vector<1x64x128xbf16>
    %101 = vector.shape_cast %100 : vector<1x64x128xbf16> to vector<64x128xbf16>
    %cst_54 = arith.constant dense<0.000000e+00> : vector<64x128xf32>
    %102 = tpu.matmul %99, %101, %cst_54 {dimension_numbers = #tpu.dot_dimension_numbers<[1], [0], [0], [1], [0, 0, 1, 1], [], []>} : vector<64x64xbf16>, vector<64x128xbf16>, vector<64x128xf32> -> vector<64x128xf32>
    %103 = arith.addf %93, %102 : vector<64x128xf32>
    %104 = vector.extract_strided_slice %96 {offsets = [0, 1, 0], sizes = [8, 8, 64], strides = [1, 1, 1]} : vector<9x9x64xf32> to vector<8x8x64xf32>
    %105 = vector.shape_cast %104 : vector<8x8x64xf32> to vector<64x64xf32>
    %106 = arith.truncf %105 : vector<64x64xf32> to vector<64x64xbf16>
    %c13 = arith.constant 13 : index
    %c0_55 = arith.constant 0 : index
    %c0_56 = arith.constant 0 : index
    %107 = vector.load %arg2[%c13, %c0_55, %c0_56] : memref<16x64x128xbf16, #tpu.memory_space<vmem>>, vector<1x64x128xbf16>
    %108 = vector.shape_cast %107 : vector<1x64x128xbf16> to vector<64x128xbf16>
    %cst_57 = arith.constant dense<0.000000e+00> : vector<64x128xf32>
    %109 = tpu.matmul %106, %108, %cst_57 {dimension_numbers = #tpu.dot_dimension_numbers<[1], [0], [0], [1], [0, 0, 1, 1], [], []>} : vector<64x64xbf16>, vector<64x128xbf16>, vector<64x128xf32> -> vector<64x128xf32>
    %110 = arith.addf %103, %109 : vector<64x128xf32>
    %111 = vector.extract_strided_slice %96 {offsets = [1, 0, 0], sizes = [8, 8, 64], strides = [1, 1, 1]} : vector<9x9x64xf32> to vector<8x8x64xf32>
    %112 = vector.shape_cast %111 : vector<8x8x64xf32> to vector<64x64xf32>
    %113 = arith.truncf %112 : vector<64x64xf32> to vector<64x64xbf16>
    %c14 = arith.constant 14 : index
    %c0_58 = arith.constant 0 : index
    %c0_59 = arith.constant 0 : index
    %114 = vector.load %arg2[%c14, %c0_58, %c0_59] : memref<16x64x128xbf16, #tpu.memory_space<vmem>>, vector<1x64x128xbf16>
    %115 = vector.shape_cast %114 : vector<1x64x128xbf16> to vector<64x128xbf16>
    %cst_60 = arith.constant dense<0.000000e+00> : vector<64x128xf32>
    %116 = tpu.matmul %113, %115, %cst_60 {dimension_numbers = #tpu.dot_dimension_numbers<[1], [0], [0], [1], [0, 0, 1, 1], [], []>} : vector<64x64xbf16>, vector<64x128xbf16>, vector<64x128xf32> -> vector<64x128xf32>
    %117 = arith.addf %110, %116 : vector<64x128xf32>
    %118 = vector.extract_strided_slice %96 {offsets = [1, 1, 0], sizes = [8, 8, 64], strides = [1, 1, 1]} : vector<9x9x64xf32> to vector<8x8x64xf32>
    %119 = vector.shape_cast %118 : vector<8x8x64xf32> to vector<64x64xf32>
    %120 = arith.truncf %119 : vector<64x64xf32> to vector<64x64xbf16>
    %c15 = arith.constant 15 : index
    %c0_61 = arith.constant 0 : index
    %c0_62 = arith.constant 0 : index
    %121 = vector.load %arg2[%c15, %c0_61, %c0_62] : memref<16x64x128xbf16, #tpu.memory_space<vmem>>, vector<1x64x128xbf16>
    %122 = vector.shape_cast %121 : vector<1x64x128xbf16> to vector<64x128xbf16>
    %cst_63 = arith.constant dense<0.000000e+00> : vector<64x128xf32>
    %123 = tpu.matmul %120, %122, %cst_63 {dimension_numbers = #tpu.dot_dimension_numbers<[1], [0], [0], [1], [0, 0, 1, 1], [], []>} : vector<64x64xbf16>, vector<64x128xbf16>, vector<64x128xf32> -> vector<64x128xf32>
    %124 = arith.addf %117, %123 : vector<64x128xf32>
    %c0_64 = arith.constant 0 : index
    %c0_65 = arith.constant 0 : index
    %c0_66 = arith.constant 0 : index
    %125 = vector.load %arg3[%c0_64, %c0_65, %c0_66] : memref<1x64x128xf32, #tpu.memory_space<vmem>>, vector<1x64x128xf32>
    %126 = vector.shape_cast %125 : vector<1x64x128xf32> to vector<64x128xf32>
    %127 = vector.shape_cast %124 : vector<64x128xf32> to vector<1x64x128xf32>
    tpu.vector_store %arg3[%c0_64, %c0_65, %c0_66], %127 {strides = array<i32>} : memref<1x64x128xf32, #tpu.memory_space<vmem>>, vector<1x64x128xf32>,
    return
  }
  func.func @transform_0(%arg0: i32) -> (i32, i32, i32, i32) {
    %c0_i32 = arith.constant 0 : i32
    %c0_i32_0 = arith.constant 0 : i32
    %c0_i32_1 = arith.constant 0 : i32
    %c0_i32_2 = arith.constant 0 : i32
    return %arg0, %c0_i32, %c0_i32_0, %c0_i32_1 : i32, i32, i32, i32
  }
  func.func @transform_1(%arg0: i32) -> (i32, i32, i32) {
    %c0_i32 = arith.constant 0 : i32
    %c0_i32_0 = arith.constant 0 : i32
    %c0_i32_1 = arith.constant 0 : i32
    %c0_i32_2 = arith.constant 0 : i32
    return %c0_i32, %c0_i32_0, %c0_i32_1 : i32, i32, i32
  }
  func.func @transform_2(%arg0: i32) -> (i32, i32, i32) {
    %c0_i32 = arith.constant 0 : i32
    %c0_i32_0 = arith.constant 0 : i32
    %c0_i32_1 = arith.constant 0 : i32
    return %arg0, %c0_i32, %c0_i32_0 : i32, i32, i32
  }
}

</mosaic_0001>

<llo_original>
// kernel: downsample.1
$region0: #{downsample.1}
  #allocation0 [shape = 'u32[]', space=smem, size = 0x4, offset = 0x4, fixed_abs, tag = 'smem constant byte address 0x4 - core index']
  #allocation1 [shape = 'u32[144,128]{1,0:T(1,128)}', space=vmem, size = 0x12000, scoped, tag = 'internal scratch']
  %s0 = inlined_call_operand.vmem [shape: bf16[8,9,9,64], index: 0, kind: input, shape index: {}]
  %s1 = inlined_call_operand.vmem [shape: bf16[16,64,128], index: 1, kind: input, shape index: {}]
  %s2 = inlined_call_operand.hbm [shape: f32[2,64,128], index: 2, kind: output, shape index: {}]
  %s3 = sld [smem:[#allocation0]]
  $region41: #{downsample.1} parent=0
    _
  %s5 = ssub.s32 1, %s3
  %s6 = scalar_select 0, %s5, %s3
  $region1: #{downsample.1} parent=0
    #allocation2 [shape = 'u8[65536]{0}', space=vmem, size = 0x10000, scoped, tag = 'output window, operand 0']
    #allocation3 [shape = 's32[2]{0}', space=sflag, size = 0x8, scoped, tag = 'scoped memory for downsample.1']
    %7 = vsyncpa [#allocation3], 0
    %s8 = scalar_lea.sflag [#allocation3], 1
    %9 = vsyncpa %s8, 0
    loop: start=0, step=1, limit=4
    $region2: #{downsample.1} parent=1 // loop_pre_header
      _
    $region3: #{downsample.1} parent=1 // loop_header
      %s11 = sphi 0, %s15
      %p12 = scmp.ge.s32.totalorder %s11, 4
      %s21 = sphi 0, %s23
      %s24 = sphi 0, %s21
      %s25 = sphi 0, %s24
      %s41 = sphi 0, %s25
      %s45 = sphi 0, %s45
      %s47 = sphi 0, %s45
      %s48 = sphi 0, %s47
      %s62 = sphi 0, %s48
      %s68 = sphi 0, %s70
      %s71 = sphi 0, %s68
      %s72 = sphi 0, %s71
      %s88 = sphi 0, %s72
    $region4: #{downsample.1} parent=1 // loop_header_branch
      %14 = sbr.rel (%p12) target = $region8
    $region5: #{downsample.1} parent=1 // loop_body
      %s16 = ssub.s32 %s11, 1
      %s17 = ssub.s32 %s11, 2
      %s18 = sadd.s32 %s11, 1
      %s19 = ssub.s32 %s11, %s18
      %p20 = scmp.eq.s32.totalorder %s19, 0
      %s22 = sadd.s32 %s21, 1
      %s23 = scalar_select %p20, %s21, %s22
      %p26 = pneg %p20
      %p27 = scmp.eq.s32.totalorder %s11, 1
      %p28 = por %p26, %p27
      %p29 = scmp.ne.s32.totalorder %s21, %s24
      %p30 = scmp.eq.s32.totalorder %s11, 0
      %p31 = por %p29, %p30
      %p32 = scmp.ne.s32.totalorder %s21, %s24
      %p33 = scmp.eq.s32.totalorder %s16, 1
      %p34 = por %p32, %p33
      %p35 = scmp.ne.s32.totalorder %s24, %s25
      %p36 = scmp.eq.s32.totalorder %s16, 0
      %p37 = por %p35, %p36
      %p38 = scmp.ne.s32.totalorder %s24, %s25
      %p39 = scmp.eq.s32.totalorder %s17, 1
      %p40 = por %p38, %p39
      %p42 = scmp.ne.s32.totalorder %s25, %s41
      %p43 = scmp.eq.s32.totalorder %s17, 0
      %p44 = por %p42, %p43
      %s46 = sadd.s32 %s45, 1
      %p49 = scmp.eq.s32.totalorder %s11, 1
      %p50 = scmp.ne.s32.totalorder %s45, %s47
      %p51 = scmp.eq.s32.totalorder %s11, 0
      %p52 = por %p50, %p51
      %p53 = scmp.ne.s32.totalorder %s45, %s47
      %p54 = scmp.eq.s32.totalorder %s16, 1
      %p55 = por %p53, %p54
      %p56 = scmp.ne.s32.totalorder %s47, %s48
      %p57 = scmp.eq.s32.totalorder %s16, 0
      %p58 = por %p56, %p57
      %p59 = scmp.ne.s32.totalorder %s47, %s48
      %p60 = scmp.eq.s32.totalorder %s17, 1
      %p61 = por %p59, %p60
      %p63 = scmp.ne.s32.totalorder %s48, %s62
      %p64 = scmp.eq.s32.totalorder %s17, 0
      %p65 = por %p63, %p64
      %s66 = ssub.s32 %s11, %s18
      %p67 = scmp.eq.s32.totalorder %s66, 0
      %s69 = sadd.s32 %s68, 1
      %s70 = scalar_select %p67, %s68, %s69
      %p73 = pneg %p67
      %p74 = scmp.eq.s32.totalorder %s11, 1
      %p75 = por %p73, %p74
      %p76 = scmp.ne.s32.totalorder %s68, %s71
      %p77 = scmp.eq.s32.totalorder %s11, 0
      %p78 = por %p76, %p77
      %p79 = scmp.ne.s32.totalorder %s68, %s71
      %p80 = scmp.eq.s32.totalorder %s16, 1
      %p81 = por %p79, %p80
      %p82 = scmp.ne.s32.totalorder %s71, %s72
      %p83 = scmp.eq.s32.totalorder %s16, 0
      %p84 = por %p82, %p83
      %p85 = scmp.ne.s32.totalorder %s71, %s72
      %p86 = scmp.eq.s32.totalorder %s17, 1
      %p87 = por %p85, %p86
      %p89 = scmp.ne.s32.totalorder %s72, %s88
      %p90 = scmp.eq.s32.totalorder %s17, 0
      %p91 = por %p89, %p90
      %p92 = scmp.le.s32.totalorder 1, %s11
      %p93 = scmp.lt.s32.totalorder %s11, 3
      %p94 = pnand %p92, %p93
      %p95 = pneg %p94
      // Predicated region
      $region9: #{downsample.1} parent=5 // pred_check
        _
      $region10: #{downsample.1} parent=5 // pred_check_branch
        %97 = sbr.rel (%p94) target = $region12
      $region11: #{downsample.1} parent=5 // pred_region
        %s98 = ssub.s32 %s11, 1
        // Predicated region
        $region13: #{downsample.1} parent=11 // pred_check
          %p99 = pneg %p58
        $region14: #{downsample.1} parent=11 // pred_check_branch
          %101 = sbr.rel (%p99) target = $region16
        $region15: #{downsample.1} parent=11 // pred_region
          _
        $region16: #{downsample.1} parent=11 // pred_fallthru
          _
      $region12: #{downsample.1} parent=5 // pred_fallthru
        _
      %p102 = scmp.lt.s32.totalorder %s11, 2
      // Predicated region
      $region17: #{downsample.1} parent=5 // pred_check
        %p103 = pneg %p102
      $region18: #{downsample.1} parent=5 // pred_check_branch
        %105 = sbr.rel (%p103) target = $region20
      $region19: #{downsample.1} parent=5 // pred_region
        // Predicated region
        $region21: #{downsample.1} parent=19 // pred_check
          %p106 = pneg %p31
        $region22: #{downsample.1} parent=19 // pred_check_branch
          %108 = sbr.rel (%p106) target = $region24
        $region23: #{downsample.1} parent=19 // pred_region
          %s109 = smul.u32 4, %s11
          %p110 = scmp.lt.s32.totalorder %s109, 7
          %s111 = scalar_select %p110, %s109, 7
          %s112 = smul.addr %s111, 18
          %s113 = smul.addr %s112, 4
          %s114 = scalar_lea.vmem %s0, %s113
          %s115 = smul.u32 4, %s11
        $region24: #{downsample.1} parent=19 // pred_fallthru
          _
      $region20: #{downsample.1} parent=5 // pred_fallthru
        _
      %p116 = scmp.le.s32.totalorder 1, %s11
      %p117 = scmp.lt.s32.totalorder %s11, 3
      %p118 = pnand %p116, %p117
      %p119 = pneg %p118
      // Predicated region
      $region25: #{downsample.1} parent=5 // pred_check
        _
      $region26: #{downsample.1} parent=5 // pred_check_branch
        %121 = sbr.rel (%p118) target = $region28
      $region27: #{downsample.1} parent=5 // pred_region
        %s122 = ssub.s32 %s11, 1
        %s123 = smul.u32 4, %s16
        %p124 = scmp.lt.s32.totalorder %s123, 7
        %s125 = scalar_select %p124, %s123, 7
        %s126 = smul.addr %s125, 18
        %s127 = smul.addr %s126, 4
        %s128 = scalar_lea.vmem %s0, %s127
        %p129 = pneg %p37
        %p130 = pneg %p34
        %p131 = pneg %p58
        %p132 = pneg %p55
        %p133 = pneg %p84
        %p134 = pneg %p81
        %s135 = sand.u32 %s71, 1
        %s136 = scalar_lea.sflag [#allocation3], %s135
        %s137 = sand.u32 %s71, 1
        %s138 = smul.addr %s137, 64
        %s139 = scalar_lea.vmem [#allocation2], %s138
        %s140 = smul.u32 4, %s16
        %p141 = scmp.lt.s32.totalorder %s140, 7
        %s142 = scalar_select %p141, %s140, 7
        %s143 = smul.addr %s142, 18
        %s144 = smul.addr %s143, 4
        %s145 = scalar_lea.vmem %s0, %s144
        %s146 = smul.u32 4, %s16
        %v148 = vld [vmem:[%s145] sm:$0xf]
        %v149 = vld [vmem:[%s145 + $0x4] sm:$0x1]
        %v150 = vld [vmem:[%s145 + $0x8] sm:$0xf]
        %v151 = vld [vmem:[%s145 + $0xc] sm:$0x1]
        %v152 = vld [vmem:[%s145 + $0x10] sm:$0xf]
        %v153 = vld [vmem:[%s145 + $0x14] sm:$0x1]
        %v154 = vld [vmem:[%s145 + $0x18] sm:$0xf]
        %v155 = vld [vmem:[%s145 + $0x1c] sm:$0x1]
        %v156 = vld [vmem:[%s145 + $0x20] sm:$0xf]
        %v157 = vld [vmem:[%s145 + $0x24] sm:$0x1]
        %v158 = vld [vmem:[%s145 + $0x28] sm:$0xf]
        %v159 = vld [vmem:[%s145 + $0x2c] sm:$0x1]
        %v160 = vld [vmem:[%s145 + $0x30] sm:$0xf]
        %v161 = vld [vmem:[%s145 + $0x34] sm:$0x1]
        %v162 = vld [vmem:[%s145 + $0x38] sm:$0xf]
        %v163 = vld [vmem:[%s145 + $0x3c] sm:$0x1]
        %v164 = vld [vmem:[%s145 + $0x40] sm:$0xf]
        %v165 = vld [vmem:[%s145 + $0x44] sm:$0x1]
        %v166 = vunpack.c.l.bf16 %v148
        %v167 = vunpack.c.l.bf16 %v149
        %v168 = vunpack.c.l.bf16 %v150
        %v169 = vunpack.c.l.bf16 %v151
        %v170 = vunpack.c.l.bf16 %v152
        %v171 = vunpack.c.l.bf16 %v153
        %v172 = vunpack.c.l.bf16 %v154
        %v173 = vunpack.c.l.bf16 %v155
        %v174 = vunpack.c.l.bf16 %v156
        %v175 = vunpack.c.l.bf16 %v157
        %v176 = vunpack.c.l.bf16 %v158
        %v177 = vunpack.c.l.bf16 %v159
        %v178 = vunpack.c.l.bf16 %v160
        %v179 = vunpack.c.l.bf16 %v161
        %v180 = vunpack.c.l.bf16 %v162
        %v181 = vunpack.c.l.bf16 %v163
        %v182 = vunpack.c.l.bf16 %v164
        %v183 = vunpack.c.l.bf16 %v165
        %v184 = vpack.c.bf16 %v168, %v166
        %v185 = vpack.c.bf16 %v172, %v170
        %v186 = vpack.c.bf16 %v176, %v174
        %v187 = vpack.c.bf16 %v180, %v178
        %v188 = vld [vmem:[%s1] sm:$0xf]
        %v189 = vld [vmem:[%s1 + $0x4] sm:$0xf]
        %v190 = vld [vmem:[%s1 + $0x8] sm:$0xf]
        %v191 = vld [vmem:[%s1 + $0xc] sm:$0xf]
        %v192 = vld [vmem:[%s1 + $0x10] sm:$0xf]
        %v193 = vld [vmem:[%s1 + $0x14] sm:$0xf]
        %v194 = vld [vmem:[%s1 + $0x18] sm:$0xf]
        %v195 = vld [vmem:[%s1 + $0x1c] sm:$0xf]
        %vm212 = vcmask 1046528
        %v213 = vrot.slane %v166, 1
        %v214 = vrot.slane %v167, 1
        %v215 = vsel %vm212, %v213, %v214
        %v216 = vrot.slane %v168, 1
        %v217 = vrot.slane %v169, 1
        %v218 = vsel %vm212, %v216, %v217
        %v219 = vrot.slane %v170, 1
        %v220 = vrot.slane %v171, 1
        %v221 = vsel %vm212, %v219, %v220
        %v222 = vrot.slane %v172, 1
        %v223 = vrot.slane %v173, 1
        %v224 = vsel %vm212, %v222, %v223
        %v225 = vrot.slane %v174, 1
        %v226 = vrot.slane %v175, 1
        %v227 = vsel %vm212, %v225, %v226
        %v228 = vrot.slane %v176, 1
        %v229 = vrot.slane %v177, 1
        %v230 = vsel %vm212, %v228, %v229
        %v231 = vrot.slane %v178, 1
        %v232 = vrot.slane %v179, 1
        %v233 = vsel %vm212, %v231, %v232
        %v234 = vrot.slane %v180, 1
        %v235 = vrot.slane %v181, 1
        %v236 = vsel %vm212, %v234, %v235
        %v245 = vpack.c.bf16 %v218, %v215
        %v246 = vpack.c.bf16 %v224, %v221
        %v247 = vpack.c.bf16 %v230, %v227
        %v248 = vpack.c.bf16 %v236, %v233
        %s249 = scalar_lea.vmem %s1, 32
        %v250 = vld [vmem:[%s249] sm:$0xf]
        %v251 = vld [vmem:[%s249 + $0x4] sm:$0xf]
        %v252 = vld [vmem:[%s249 + $0x8] sm:$0xf]
        %v253 = vld [vmem:[%s249 + $0xc] sm:$0xf]
        %v254 = vld [vmem:[%s249 + $0x10] sm:$0xf]
        %v255 = vld [vmem:[%s249 + $0x14] sm:$0xf]
        %v256 = vld [vmem:[%s249 + $0x18] sm:$0xf]
        %v257 = vld [vmem:[%s249 + $0x1c] sm:$0xf]
        %v266 = vunpack.c.l.b16 %v250
        %v267 = vunpack.c.l.b16 %v251
        %v268 = vunpack.c.l.b16 %v252
        %v269 = vunpack.c.l.b16 %v253
        %v270 = vunpack.c.l.b16 %v254
        %v271 = vunpack.c.l.b16 %v255
        %v272 = vunpack.c.l.b16 %v256
        %v273 = vunpack.c.l.b16 %v257
        %v274 = vpack.c.b16 %v267, %v266
        %v275 = vpack.c.b16 %v269, %v268
        %v276 = vpack.c.b16 %v271, %v270
        %v277 = vpack.c.b16 %v273, %v272
        %vm282 = vcmask 523264
        %v284 = vsel %vm282, %v245, 0
        %v287 = vsel %vm282, %v246, 0
        %v290 = vsel %vm282, %v247, 0
        %v293 = vsel %vm282, %v248, 0
        %295 = vmatprep.subr.bf16.mxu0 0
        %296 = vmatpush1.bf16.msra.mxu0 %v274
        %297 = vmatprep.subr.bf16.mxu0 0
        %298 = vmatpush1.bf16.msra.mxu0 %v275
        %299 = vmatprep.subr.bf16.mxu0 0
        %300 = vmatpush1.bf16.msra.mxu0 %v276
        %301 = vmatprep.subr.bf16.mxu0 0
        %302 = vmatpush1.bf16.msra.mxu0 %v277
        %303 = vmatprep.subr.bf16.mxu0 0
        %304 = vmatpush1.bf16.msra.mxu0 0
        %305 = vmatprep.subr.bf16.mxu0 0
        %306 = vmatpush1.bf16.msra.mxu0 0
        %307 = vmatprep.subr.bf16.mxu0 0
        %308 = vmatpush1.bf16.msra.mxu0 0
        %309 = vmatprep.subr.bf16.mxu0 0
        %310 = vmatpush1.bf16.msra.mxu0 0
        %311 = vmatprep.subr.bf16.mxu0 0
        %312 = vmatpush1.bf16.msra.mxu0 0
        %313 = vmatprep.subr.bf16.mxu0 0
        %314 = vmatpush1.bf16.msra.mxu0 0
        %315 = vmatprep.subr.bf16.mxu0 0
        %316 = vmatpush1.bf16.msra.mxu0 0
        %317 = vmatprep.subr.bf16.mxu0 0
        %318 = vmatpush1.bf16.msra.mxu0 0
        %319 = vmatprep.subr.bf16.mxu0 0
        %320 = vmatpush1.bf16.msra.mxu0 0
        %321 = vmatprep.subr.bf16.mxu0 0
        %322 = vmatpush1.bf16.msra.mxu0 0
        %323 = vmatprep.subr.bf16.mxu0 0
        %324 = vmatpush1.bf16.msra.mxu0 0
        %325 = vmatprep.subr.bf16.mxu0 0
        %326 = vmatpush1.bf16.msra.mxu0 0
        %327 = vmatprep.mubr.bf16.mxu0 0
        %328 = vmatmul.mubr.bf16.gmra.mrb[0].mxu0 %v284
        %v329 = vpop.f32.mrb[0].mxu0
        %v330 = vadd.f32 0.0, %v329
        %v331 = vpop.f32.mrb[0].mxu0
        %v332 = vpop.f32.mrb[0].mxu0
        %v333 = vadd.f32 0.0, %v332
        %v334 = vpop.f32.mrb[0].mxu0
        %335 = vmatprep.mubr.bf16.mxu0 0
        %336 = vmatmul.mubr.bf16.gmra.mrb[0].mxu0 %v287
        %v337 = vpop.f32.mrb[0].mxu0
        %v338 = vadd.f32 0.0, %v337
        %v339 = vpop.f32.mrb[0].mxu0
        %v340 = vpop.f32.mrb[0].mxu0
        %v341 = vadd.f32 0.0, %v340
        %v342 = vpop.f32.mrb[0].mxu0
        %343 = vmatprep.mubr.bf16.mxu0 0
        %344 = vmatmul.mubr.bf16.gmra.mrb[0].mxu0 %v290
        %v345 = vpop.f32.mrb[0].mxu0
        %v346 = vadd.f32 0.0, %v345
        %v347 = vpop.f32.mrb[0].mxu0
        %v348 = vpop.f32.mrb[0].mxu0
        %v349 = vadd.f32 0.0, %v348
        %v350 = vpop.f32.mrb[0].mxu0
        %351 = vmatprep.mubr.bf16.mxu0 0
        %352 = vmatmul.mubr.bf16.gmra.mrb[0].mxu0 %v293
        %v353 = vpop.f32.mrb[0].mxu0
        %v354 = vadd.f32 0.0, %v353
        %v355 = vpop.f32.mrb[0].mxu0
        %v356 = vpop.f32.mrb[0].mxu0
        %v357 = vadd.f32 0.0, %v356
        %v358 = vpop.f32.mrb[0].mxu0
        %359 = vdwg.mxu0
        %v368 = vunpack.c.l.b16 %v188
        %v369 = vunpack.c.l.b16 %v189
        %v370 = vunpack.c.l.b16 %v190
        %v371 = vunpack.c.l.b16 %v191
        %v372 = vunpack.c.l.b16 %v192
        %v373 = vunpack.c.l.b16 %v193
        %v374 = vunpack.c.l.b16 %v194
        %v375 = vunpack.c.l.b16 %v195
        %v376 = vpack.c.b16 %v369, %v368
        %v377 = vpack.c.b16 %v371, %v370
        %v378 = vpack.c.b16 %v373, %v372
        %v379 = vpack.c.b16 %v375, %v374
        %v385 = vsel %vm282, %v184, 0
        %v388 = vsel %vm282, %v185, 0
        %v391 = vsel %vm282, %v186, 0
        %v394 = vsel %vm282, %v187, 0
        %396 = vmatprep.subr.bf16.mxu0 0
        %397 = vmatpush1.bf16.msra.mxu0 %v376
        %398 = vmatprep.subr.bf16.mxu0 0
        %399 = vmatpush1.bf16.msra.mxu0 %v377
        %400 = vmatprep.subr.bf16.mxu0 0
        %401 = vmatpush1.bf16.msra.mxu0 %v378
        %402 = vmatprep.subr.bf16.mxu0 0
        %403 = vmatpush1.bf16.msra.mxu0 %v379
        %404 = vmatprep.subr.bf16.mxu0 0
        %405 = vmatpush1.bf16.msra.mxu0 0
        %406 = vmatprep.subr.bf16.mxu0 0
        %407 = vmatpush1.bf16.msra.mxu0 0
        %408 = vmatprep.subr.bf16.mxu0 0
        %409 = vmatpush1.bf16.msra.mxu0 0
        %410 = vmatprep.subr.bf16.mxu0 0
        %411 = vmatpush1.bf16.msra.mxu0 0
        %412 = vmatprep.subr.bf16.mxu0 0
        %413 = vmatpush1.bf16.msra.mxu0 0
        %414 = vmatprep.subr.bf16.mxu0 0
        %415 = vmatpush1.bf16.msra.mxu0 0
        %416 = vmatprep.subr.bf16.mxu0 0
        %417 = vmatpush1.bf16.msra.mxu0 0
        %418 = vmatprep.subr.bf16.mxu0 0
        %419 = vmatpush1.bf16.msra.mxu0 0
        %420 = vmatprep.subr.bf16.mxu0 0
        %421 = vmatpush1.bf16.msra.mxu0 0
        %422 = vmatprep.subr.bf16.mxu0 0
        %423 = vmatpush1.bf16.msra.mxu0 0
        %424 = vmatprep.subr.bf16.mxu0 0
        %425 = vmatpush1.bf16.msra.mxu0 0
        %426 = vmatprep.subr.bf16.mxu0 0
        %427 = vmatpush1.bf16.msra.mxu0 0
        %428 = vmatprep.mubr.bf16.mxu0 0
        %429 = vmatmul.mubr.bf16.gmra.mrb[0].mxu0 %v385
        %v430 = vpop.f32.mrb[0].mxu0
        %v431 = vadd.f32 %v330, %v430
        %v432 = vpop.f32.mrb[0].mxu0
        %v433 = vpop.f32.mrb[0].mxu0
        %v434 = vadd.f32 %v333, %v433
        %v435 = vpop.f32.mrb[0].mxu0
        %436 = vmatprep.mubr.bf16.mxu0 0
        %437 = vmatmul.mubr.bf16.gmra.mrb[0].mxu0 %v388
        %v438 = vpop.f32.mrb[0].mxu0
        %v439 = vadd.f32 %v338, %v438
        %v440 = vpop.f32.mrb[0].mxu0
        %v441 = vpop.f32.mrb[0].mxu0
        %v442 = vadd.f32 %v341, %v441
        %v443 = vpop.f32.mrb[0].mxu0
        %444 = vmatprep.mubr.bf16.mxu0 0
        %445 = vmatmul.mubr.bf16.gmra.mrb[0].mxu0 %v391
        %v446 = vpop.f32.mrb[0].mxu0
        %v447 = vadd.f32 %v346, %v446
        %v448 = vpop.f32.mrb[0].mxu0
        %v449 = vpop.f32.mrb[0].mxu0
        %v450 = vadd.f32 %v349, %v449
        %v451 = vpop.f32.mrb[0].mxu0
        %452 = vmatprep.mubr.bf16.mxu0 0
        %453 = vmatmul.mubr.bf16.gmra.mrb[0].mxu0 %v394
        %v454 = vpop.f32.mrb[0].mxu0
        %v455 = vadd.f32 %v354, %v454
        %v456 = vpop.f32.mrb[0].mxu0
        %v457 = vpop.f32.mrb[0].mxu0
        %v458 = vadd.f32 %v357, %v457
        %v459 = vpop.f32.mrb[0].mxu0
        %460 = vdwg.mxu0
        %v461 = vpack.c.bf16 %v170, %v168
        %v462 = vpack.c.bf16 %v174, %v172
        %v463 = vpack.c.bf16 %v178, %v176
        %v464 = vpack.c.bf16 %v182, %v180
        %s465 = scalar_lea.vmem %s1, 64
        %v466 = vld [vmem:[%s465] sm:$0xf]
        %v467 = vld [vmem:[%s465 + $0x4] sm:$0xf]
        %v468 = vld [vmem:[%s465 + $0x8] sm:$0xf]
        %v469 = vld [vmem:[%s465 + $0xc] sm:$0xf]
        %v470 = vld [vmem:[%s465 + $0x10] sm:$0xf]
        %v471 = vld [vmem:[%s465 + $0x14] sm:$0xf]
        %v472 = vld [vmem:[%s465 + $0x18] sm:$0xf]
        %v473 = vld [vmem:[%s465 + $0x1c] sm:$0xf]
        %v482 = vunpack.c.l.b16 %v466
        %v483 = vunpack.c.l.b16 %v467
        %v484 = vunpack.c.l.b16 %v468
        %v485 = vunpack.c.l.b16 %v469
        %v486 = vunpack.c.l.b16 %v470
        %v487 = vunpack.c.l.b16 %v471
        %v488 = vunpack.c.l.b16 %v472
        %v489 = vunpack.c.l.b16 %v473
        %v490 = vpack.c.b16 %v483, %v482
        %v491 = vpack.c.b16 %v485, %v484
        %v492 = vpack.c.b16 %v487, %v486
        %v493 = vpack.c.b16 %v489, %v488
        %v499 = vsel %vm282, %v461, 0
        %v502 = vsel %vm282, %v462, 0
        %v505 = vsel %vm282, %v463, 0
        %v508 = vsel %vm282, %v464, 0
        %510 = vmatprep.subr.bf16.mxu0 0
        %511 = vmatpush1.bf16.msra.mxu0 %v490
        %512 = vmatprep.subr.bf16.mxu0 0
        %513 = vmatpush1.bf16.msra.mxu0 %v491
        %514 = vmatprep.subr.bf16.mxu0 0
        %515 = vmatpush1.bf16.msra.mxu0 %v492
        %516 = vmatprep.subr.bf16.mxu0 0
        %517 = vmatpush1.bf16.msra.mxu0 %v493
        %518 = vmatprep.subr.bf16.mxu0 0
        %519 = vmatpush1.bf16.msra.mxu0 0
        %520 = vmatprep.subr.bf16.mxu0 0
        %521 = vmatpush1.bf16.msra.mxu0 0
        %522 = vmatprep.subr.bf16.mxu0 0
        %523 = vmatpush1.bf16.msra.mxu0 0
        %524 = vmatprep.subr.bf16.mxu0 0
        %525 = vmatpush1.bf16.msra.mxu0 0
        %526 = vmatprep.subr.bf16.mxu0 0
        %527 = vmatpush1.bf16.msra.mxu0 0
        %528 = vmatprep.subr.bf16.mxu0 0
        %529 = vmatpush1.bf16.msra.mxu0 0
        %530 = vmatprep.subr.bf16.mxu0 0
        %531 = vmatpush1.bf16.msra.mxu0 0
        %532 = vmatprep.subr.bf16.mxu0 0
        %533 = vmatpush1.bf16.msra.mxu0 0
        %534 = vmatprep.subr.bf16.mxu0 0
        %535 = vmatpush1.bf16.msra.mxu0 0
        %536 = vmatprep.subr.bf16.mxu0 0
        %537 = vmatpush1.bf16.msra.mxu0 0
        %538 = vmatprep.subr.bf16.mxu0 0
        %539 = vmatpush1.bf16.msra.mxu0 0
        %540 = vmatprep.subr.bf16.mxu0 0
        %541 = vmatpush1.bf16.msra.mxu0 0
        %542 = vmatprep.mubr.bf16.mxu0 0
        %543 = vmatmul.mubr.bf16.gmra.mrb[0].mxu0 %v499
        %v544 = vpop.f32.mrb[0].mxu0
        %v545 = vadd.f32 0.0, %v544
        %v546 = vpop.f32.mrb[0].mxu0
        %v547 = vpop.f32.mrb[0].mxu0
        %v548 = vadd.f32 0.0, %v547
        %v549 = vpop.f32.mrb[0].mxu0
        %550 = vmatprep.mubr.bf16.mxu0 0
        %551 = vmatmul.mubr.bf16.gmra.mrb[0].mxu0 %v502
        %v552 = vpop.f32.mrb[0].mxu0
        %v553 = vadd.f32 0.0, %v552
        %v554 = vpop.f32.mrb[0].mxu0
        %v555 = vpop.f32.mrb[0].mxu0
        %v556 = vadd.f32 0.0, %v555
        %v557 = vpop.f32.mrb[0].mxu0
        %558 = vmatprep.mubr.bf16.mxu0 0
        %559 = vmatmul.mubr.bf16.gmra.mrb[0].mxu0 %v505
        %v560 = vpop.f32.mrb[0].mxu0
        %v561 = vadd.f32 0.0, %v560
        %v562 = vpop.f32.mrb[0].mxu0
        %v563 = vpop.f32.mrb[0].mxu0
        %v564 = vadd.f32 0.0, %v563
        %v565 = vpop.f32.mrb[0].mxu0
        %566 = vmatprep.mubr.bf16.mxu0 0
        %567 = vmatmul.mubr.bf16.gmra.mrb[0].mxu0 %v508
        %v568 = vpop.f32.mrb[0].mxu0
        %v569 = vadd.f32 0.0, %v568
        %v570 = vpop.f32.mrb[0].mxu0
        %v571 = vpop.f32.mrb[0].mxu0
        %v572 = vadd.f32 0.0, %v571
        %v573 = vpop.f32.mrb[0].mxu0
        %574 = vdwg.mxu0
        %v575 = vadd.f32 %v431, %v545
        %v576 = vadd.f32 %v434, %v548
        %v577 = vadd.f32 %v439, %v553
        %v578 = vadd.f32 %v442, %v556
        %v579 = vadd.f32 %v447, %v561
        %v580 = vadd.f32 %v450, %v564
        %v581 = vadd.f32 %v455, %v569
        %v582 = vadd.f32 %v458, %v572
        %v585 = vrot.slane %v182, 1
        %v586 = vrot.slane %v183, 1
        %v587 = vsel %vm212, %v585, %v586
        %v589 = vpack.c.bf16 %v221, %v218
        %v590 = vpack.c.bf16 %v227, %v224
        %v591 = vpack.c.bf16 %v233, %v230
        %v592 = vpack.c.bf16 %v587, %v236
        %s593 = scalar_lea.vmem %s1, 96
        %v594 = vld [vmem:[%s593] sm:$0xf]
        %v595 = vld [vmem:[%s593 + $0x4] sm:$0xf]
        %v596 = vld [vmem:[%s593 + $0x8] sm:$0xf]
        %v597 = vld [vmem:[%s593 + $0xc] sm:$0xf]
        %v598 = vld [vmem:[%s593 + $0x10] sm:$0xf]
        %v599 = vld [vmem:[%s593 + $0x14] sm:$0xf]
        %v600 = vld [vmem:[%s593 + $0x18] sm:$0xf]
        %v601 = vld [vmem:[%s593 + $0x1c] sm:$0xf]
        %v610 = vunpack.c.l.b16 %v594
        %v611 = vunpack.c.l.b16 %v595
        %v612 = vunpack.c.l.b16 %v596
        %v613 = vunpack.c.l.b16 %v597
        %v614 = vunpack.c.l.b16 %v598
        %v615 = vunpack.c.l.b16 %v599
        %v616 = vunpack.c.l.b16 %v600
        %v617 = vunpack.c.l.b16 %v601
        %v618 = vpack.c.b16 %v611, %v610
        %v619 = vpack.c.b16 %v613, %v612
        %v620 = vpack.c.b16 %v615, %v614
        %v621 = vpack.c.b16 %v617, %v616
        %v627 = vsel %vm282, %v589, 0
        %v630 = vsel %vm282, %v590, 0
        %v633 = vsel %vm282, %v591, 0
        %v636 = vsel %vm282, %v592, 0
        %638 = vmatprep.subr.bf16.mxu0 0
        %639 = vmatpush1.bf16.msra.mxu0 %v618
        %640 = vmatprep.subr.bf16.mxu0 0
        %641 = vmatpush1.bf16.msra.mxu0 %v619
        %642 = vmatprep.subr.bf16.mxu0 0
        %643 = vmatpush1.bf16.msra.mxu0 %v620
        %644 = vmatprep.subr.bf16.mxu0 0
        %645 = vmatpush1.bf16.msra.mxu0 %v621
        %646 = vmatprep.subr.bf16.mxu0 0
        %647 = vmatpush1.bf16.msra.mxu0 0
        %648 = vmatprep.subr.bf16.mxu0 0
        %649 = vmatpush1.bf16.msra.mxu0 0
        %650 = vmatprep.subr.bf16.mxu0 0
        %651 = vmatpush1.bf16.msra.mxu0 0
        %652 = vmatprep.subr.bf16.mxu0 0
        %653 = vmatpush1.bf16.msra.mxu0 0
        %654 = vmatprep.subr.bf16.mxu0 0
        %655 = vmatpush1.bf16.msra.mxu0 0
        %656 = vmatprep.subr.bf16.mxu0 0
        %657 = vmatpush1.bf16.msra.mxu0 0
        %658 = vmatprep.subr.bf16.mxu0 0
        %659 = vmatpush1.bf16.msra.mxu0 0
        %660 = vmatprep.subr.bf16.mxu0 0
        %661 = vmatpush1.bf16.msra.mxu0 0
        %662 = vmatprep.subr.bf16.mxu0 0
        %663 = vmatpush1.bf16.msra.mxu0 0
        %664 = vmatprep.subr.bf16.mxu0 0
        %665 = vmatpush1.bf16.msra.mxu0 0
        %666 = vmatprep.subr.bf16.mxu0 0
        %667 = vmatpush1.bf16.msra.mxu0 0
        %668 = vmatprep.subr.bf16.mxu0 0
        %669 = vmatpush1.bf16.msra.mxu0 0
        %670 = vmatprep.mubr.bf16.mxu0 0
        %671 = vmatmul.mubr.bf16.gmra.mrb[0].mxu0 %v627
        %v672 = vpop.f32.mrb[0].mxu0
        %v673 = vadd.f32 0.0, %v672
        %v674 = vpop.f32.mrb[0].mxu0
        %v675 = vpop.f32.mrb[0].mxu0
        %v676 = vadd.f32 0.0, %v675
        %v677 = vpop.f32.mrb[0].mxu0
        %678 = vmatprep.mubr.bf16.mxu0 0
        %679 = vmatmul.mubr.bf16.gmra.mrb[0].mxu0 %v630
        %v680 = vpop.f32.mrb[0].mxu0
        %v681 = vadd.f32 0.0, %v680
        %v682 = vpop.f32.mrb[0].mxu0
        %v683 = vpop.f32.mrb[0].mxu0
        %v684 = vadd.f32 0.0, %v683
        %v685 = vpop.f32.mrb[0].mxu0
        %686 = vmatprep.mubr.bf16.mxu0 0
        %687 = vmatmul.mubr.bf16.gmra.mrb[0].mxu0 %v633
        %v688 = vpop.f32.mrb[0].mxu0
        %v689 = vadd.f32 0.0, %v688
        %v690 = vpop.f32.mrb[0].mxu0
        %v691 = vpop.f32.mrb[0].mxu0
        %v692 = vadd.f32 0.0, %v691
        %v693 = vpop.f32.mrb[0].mxu0
        %694 = vmatprep.mubr.bf16.mxu0 0
        %695 = vmatmul.mubr.bf16.gmra.mrb[0].mxu0 %v636
        %v696 = vpop.f32.mrb[0].mxu0
        %v697 = vadd.f32 0.0, %v696
        %v698 = vpop.f32.mrb[0].mxu0
        %v699 = vpop.f32.mrb[0].mxu0
        %v700 = vadd.f32 0.0, %v699
        %v701 = vpop.f32.mrb[0].mxu0
        %702 = vdwg.mxu0
        %v703 = vadd.f32 %v575, %v673
        %v704 = vadd.f32 %v576, %v676
        %v705 = vadd.f32 %v577, %v681
        %v706 = vadd.f32 %v578, %v684
        %v707 = vadd.f32 %v579, %v689
        %v708 = vadd.f32 %v580, %v692
        %v709 = vadd.f32 %v581, %v697
        %v710 = vadd.f32 %v582, %v700
        %s711 = scalar_lea.vmem %s145, 72
        %v712 = vld [vmem:[%s711] sm:$0xf]
        %v713 = vld [vmem:[%s711 + $0x4] sm:$0x1]
        %v714 = vld [vmem:[%s711 + $0x8] sm:$0xf]
        %v715 = vld [vmem:[%s711 + $0xc] sm:$0x1]
        %v716 = vld [vmem:[%s711 + $0x10] sm:$0xf]
        %v717 = vld [vmem:[%s711 + $0x14] sm:$0x1]
        %v718 = vld [vmem:[%s711 + $0x18] sm:$0xf]
        %v719 = vld [vmem:[%s711 + $0x1c] sm:$0x1]
        %v720 = vld [vmem:[%s711 + $0x20] sm:$0xf]
        %v721 = vld [vmem:[%s711 + $0x24] sm:$0x1]
        %v722 = vld [vmem:[%s711 + $0x28] sm:$0xf]
        %v723 = vld [vmem:[%s711 + $0x2c] sm:$0x1]
        %v724 = vld [vmem:[%s711 + $0x30] sm:$0xf]
        %v725 = vld [vmem:[%s711 + $0x34] sm:$0x1]
        %v726 = vld [vmem:[%s711 + $0x38] sm:$0xf]
        %v727 = vld [vmem:[%s711 + $0x3c] sm:$0x1]
        %v728 = vld [vmem:[%s711 + $0x40] sm:$0xf]
        %v729 = vld [vmem:[%s711 + $0x44] sm:$0x1]
        %v730 = vunpack.c.l.bf16 %v712
        %v731 = vunpack.c.l.bf16 %v713
        %v732 = vunpack.c.l.bf16 %v714
        %v733 = vunpack.c.l.bf16 %v715
        %v734 = vunpack.c.l.bf16 %v716
        %v735 = vunpack.c.l.bf16 %v717
        %v736 = vunpack.c.l.bf16 %v718
        %v737 = vunpack.c.l.bf16 %v719
        %v738 = vunpack.c.l.bf16 %v720
        %v739 = vunpack.c.l.bf16 %v721
        %v740 = vunpack.c.l.bf16 %v722
        %v741 = vunpack.c.l.bf16 %v723
        %v742 = vunpack.c.l.bf16 %v724
        %v743 = vunpack.c.l.bf16 %v725
        %v744 = vunpack.c.l.bf16 %v726
        %v745 = vunpack.c.l.bf16 %v727
        %v746 = vunpack.c.l.bf16 %v728
        %v747 = vunpack.c.l.bf16 %v729
        %v748 = vpack.c.bf16 %v732, %v730
        %v749 = vpack.c.bf16 %v736, %v734
        %v750 = vpack.c.bf16 %v740, %v738
        %v751 = vpack.c.bf16 %v744, %v742
        %s752 = scalar_lea.vmem %s1, 128
        %v753 = vld [vmem:[%s752] sm:$0xf]
        %v754 = vld [vmem:[%s752 + $0x4] sm:$0xf]
        %v755 = vld [vmem:[%s752 + $0x8] sm:$0xf]
        %v756 = vld [vmem:[%s752 + $0xc] sm:$0xf]
        %v757 = vld [vmem:[%s752 + $0x10] sm:$0xf]
        %v758 = vld [vmem:[%s752 + $0x14] sm:$0xf]
        %v759 = vld [vmem:[%s752 + $0x18] sm:$0xf]
        %v760 = vld [vmem:[%s752 + $0x1c] sm:$0xf]
        %v769 = vunpack.c.l.b16 %v753
        %v770 = vunpack.c.l.b16 %v754
        %v771 = vunpack.c.l.b16 %v755
        %v772 = vunpack.c.l.b16 %v756
        %v773 = vunpack.c.l.b16 %v757
        %v774 = vunpack.c.l.b16 %v758
        %v775 = vunpack.c.l.b16 %v759
        %v776 = vunpack.c.l.b16 %v760
        %v777 = vpack.c.b16 %v770, %v769
        %v778 = vpack.c.b16 %v772, %v771
        %v779 = vpack.c.b16 %v774, %v773
        %v780 = vpack.c.b16 %v776, %v775
        %v786 = vsel %vm282, %v748, 0
        %v789 = vsel %vm282, %v749, 0
        %v792 = vsel %vm282, %v750, 0
        %v795 = vsel %vm282, %v751, 0
        %797 = vmatprep.subr.bf16.mxu0 0
        %798 = vmatpush1.bf16.msra.mxu0 %v777
        %799 = vmatprep.subr.bf16.mxu0 0
        %800 = vmatpush1.bf16.msra.mxu0 %v778
        %801 = vmatprep.subr.bf16.mxu0 0
        %802 = vmatpush1.bf16.msra.mxu0 %v779
        %803 = vmatprep.subr.bf16.mxu0 0
        %804 = vmatpush1.bf16.msra.mxu0 %v780
        %805 = vmatprep.subr.bf16.mxu0 0
        %806 = vmatpush1.bf16.msra.mxu0 0
        %807 = vmatprep.subr.bf16.mxu0 0
        %808 = vmatpush1.bf16.msra.mxu0 0
        %809 = vmatprep.subr.bf16.mxu0 0
        %810 = vmatpush1.bf16.msra.mxu0 0
        %811 = vmatprep.subr.bf16.mxu0 0
        %812 = vmatpush1.bf16.msra.mxu0 0
        %813 = vmatprep.subr.bf16.mxu0 0
        %814 = vmatpush1.bf16.msra.mxu0 0
        %815 = vmatprep.subr.bf16.mxu0 0
        %816 = vmatpush1.bf16.msra.mxu0 0
        %817 = vmatprep.subr.bf16.mxu0 0
        %818 = vmatpush1.bf16.msra.mxu0 0
        %819 = vmatprep.subr.bf16.mxu0 0
        %820 = vmatpush1.bf16.msra.mxu0 0
        %821 = vmatprep.subr.bf16.mxu0 0
        %822 = vmatpush1.bf16.msra.mxu0 0
        %823 = vmatprep.subr.bf16.mxu0 0
        %824 = vmatpush1.bf16.msra.mxu0 0
        %825 = vmatprep.subr.bf16.mxu0 0
        %826 = vmatpush1.bf16.msra.mxu0 0
        %827 = vmatprep.subr.bf16.mxu0 0
        %828 = vmatpush1.bf16.msra.mxu0 0
        %829 = vmatprep.mubr.bf16.mxu0 0
        %830 = vmatmul.mubr.bf16.gmra.mrb[0].mxu0 %v786
        %v831 = vpop.f32.mrb[0].mxu0
        %v832 = vadd.f32 0.0, %v831
        %v833 = vpop.f32.mrb[0].mxu0
        %v834 = vpop.f32.mrb[0].mxu0
        %v835 = vadd.f32 0.0, %v834
        %v836 = vpop.f32.mrb[0].mxu0
        %837 = vmatprep.mubr.bf16.mxu0 0
        %838 = vmatmul.mubr.bf16.gmra.mrb[0].mxu0 %v789
        %v839 = vpop.f32.mrb[0].mxu0
        %v840 = vadd.f32 0.0, %v839
        %v841 = vpop.f32.mrb[0].mxu0
        %v842 = vpop.f32.mrb[0].mxu0
        %v843 = vadd.f32 0.0, %v842
        %v844 = vpop.f32.mrb[0].mxu0
        %845 = vmatprep.mubr.bf16.mxu0 0
        %846 = vmatmul.mubr.bf16.gmra.mrb[0].mxu0 %v792
        %v847 = vpop.f32.mrb[0].mxu0
        %v848 = vadd.f32 0.0, %v847
        %v849 = vpop.f32.mrb[0].mxu0
        %v850 = vpop.f32.mrb[0].mxu0
        %v851 = vadd.f32 0.0, %v850
        %v852 = vpop.f32.mrb[0].mxu0
        %853 = vmatprep.mubr.bf16.mxu0 0
        %854 = vmatmul.mubr.bf16.gmra.mrb[0].mxu0 %v795
        %v855 = vpop.f32.mrb[0].mxu0
        %v856 = vadd.f32 0.0, %v855
        %v857 = vpop.f32.mrb[0].mxu0
        %v858 = vpop.f32.mrb[0].mxu0
        %v859 = vadd.f32 0.0, %v858
        %v860 = vpop.f32.mrb[0].mxu0
        %861 = vdwg.mxu0
        %v862 = vadd.f32 %v703, %v832
        %v863 = vadd.f32 %v704, %v835
        %v864 = vadd.f32 %v705, %v840
        %v865 = vadd.f32 %v706, %v843
        %v866 = vadd.f32 %v707, %v848
        %v867 = vadd.f32 %v708, %v851
        %v868 = vadd.f32 %v709, %v856
        %v869 = vadd.f32 %v710, %v859
        %v886 = vrot.slane %v730, 1
        %v887 = vrot.slane %v731, 1
        %v888 = vsel %vm212, %v886, %v887
        %v889 = vrot.slane %v732, 1
        %v890 = vrot.slane %v733, 1
        %v891 = vsel %vm212, %v889, %v890
        %v892 = vrot.slane %v734, 1
        %v893 = vrot.slane %v735, 1
        %v894 = vsel %vm212, %v892, %v893
        %v895 = vrot.slane %v736, 1
        %v896 = vrot.slane %v737, 1
        %v897 = vsel %vm212, %v895, %v896
        %v898 = vrot.slane %v738, 1
        %v899 = vrot.slane %v739, 1
        %v900 = vsel %vm212, %v898, %v899
        %v901 = vrot.slane %v740, 1
        %v902 = vrot.slane %v741, 1
        %v903 = vsel %vm212, %v901, %v902
        %v904 = vrot.slane %v742, 1
        %v905 = vrot.slane %v743, 1
        %v906 = vsel %vm212, %v904, %v905
        %v907 = vrot.slane %v744, 1
        %v908 = vrot.slane %v745, 1
        %v909 = vsel %vm212, %v907, %v908
        %v918 = vpack.c.bf16 %v891, %v888
        %v919 = vpack.c.bf16 %v897, %v894
        %v920 = vpack.c.bf16 %v903, %v900
        %v921 = vpack.c.bf16 %v909, %v906
        %s922 = scalar_lea.vmem %s1, 160
        %v923 = vld [vmem:[%s922] sm:$0xf]
        %v924 = vld [vmem:[%s922 + $0x4] sm:$0xf]
        %v925 = vld [vmem:[%s922 + $0x8] sm:$0xf]
        %v926 = vld [vmem:[%s922 + $0xc] sm:$0xf]
        %v927 = vld [vmem:[%s922 + $0x10] sm:$0xf]
        %v928 = vld [vmem:[%s922 + $0x14] sm:$0xf]
        %v929 = vld [vmem:[%s922 + $0x18] sm:$0xf]
        %v930 = vld [vmem:[%s922 + $0x1c] sm:$0xf]
        %v939 = vunpack.c.l.b16 %v923
        %v940 = vunpack.c.l.b16 %v924
        %v941 = vunpack.c.l.b16 %v925
        %v942 = vunpack.c.l.b16 %v926
        %v943 = vunpack.c.l.b16 %v927
        %v944 = vunpack.c.l.b16 %v928
        %v945 = vunpack.c.l.b16 %v929
        %v946 = vunpack.c.l.b16 %v930
        %v947 = vpack.c.b16 %v940, %v939
        %v948 = vpack.c.b16 %v942, %v941
        %v949 = vpack.c.b16 %v944, %v943
        %v950 = vpack.c.b16 %v946, %v945
        %v956 = vsel %vm282, %v918, 0
        %v959 = vsel %vm282, %v919, 0
        %v962 = vsel %vm282, %v920, 0
        %v965 = vsel %vm282, %v921, 0
        %967 = vmatprep.subr.bf16.mxu0 0
        %968 = vmatpush1.bf16.msra.mxu0 %v947
        %969 = vmatprep.subr.bf16.mxu0 0
        %970 = vmatpush1.bf16.msra.mxu0 %v948
        %971 = vmatprep.subr.bf16.mxu0 0
        %972 = vmatpush1.bf16.msra.mxu0 %v949
        %973 = vmatprep.subr.bf16.mxu0 0
        %974 = vmatpush1.bf16.msra.mxu0 %v950
        %975 = vmatprep.subr.bf16.mxu0 0
        %976 = vmatpush1.bf16.msra.mxu0 0
        %977 = vmatprep.subr.bf16.mxu0 0
        %978 = vmatpush1.bf16.msra.mxu0 0
        %979 = vmatprep.subr.bf16.mxu0 0
        %980 = vmatpush1.bf16.msra.mxu0 0
        %981 = vmatprep.subr.bf16.mxu0 0
        %982 = vmatpush1.bf16.msra.mxu0 0
        %983 = vmatprep.subr.bf16.mxu0 0
        %984 = vmatpush1.bf16.msra.mxu0 0
        %985 = vmatprep.subr.bf16.mxu0 0
        %986 = vmatpush1.bf16.msra.mxu0 0
        %987 = vmatprep.subr.bf16.mxu0 0
        %988 = vmatpush1.bf16.msra.mxu0 0
        %989 = vmatprep.subr.bf16.mxu0 0
        %990 = vmatpush1.bf16.msra.mxu0 0
        %991 = vmatprep.subr.bf16.mxu0 0
        %992 = vmatpush1.bf16.msra.mxu0 0
        %993 = vmatprep.subr.bf16.mxu0 0
        %994 = vmatpush1.bf16.msra.mxu0 0
        %995 = vmatprep.subr.bf16.mxu0 0
        %996 = vmatpush1.bf16.msra.mxu0 0
        %997 = vmatprep.subr.bf16.mxu0 0
        %998 = vmatpush1.bf16.msra.mxu0 0
        %999 = vmatprep.mubr.bf16.mxu0 0
        %1000 = vmatmul.mubr.bf16.gmra.mrb[0].mxu0 %v956
        %v1001 = vpop.f32.mrb[0].mxu0
        %v1002 = vadd.f32 0.0, %v1001
        %v1003 = vpop.f32.mrb[0].mxu0
        %v1004 = vpop.f32.mrb[0].mxu0
        %v1005 = vadd.f32 0.0, %v1004
        %v1006 = vpop.f32.mrb[0].mxu0
        %1007 = vmatprep.mubr.bf16.mxu0 0
        %1008 = vmatmul.mubr.bf16.gmra.mrb[0].mxu0 %v959
        %v1009 = vpop.f32.mrb[0].mxu0
        %v1010 = vadd.f32 0.0, %v1009
        %v1011 = vpop.f32.mrb[0].mxu0
        %v1012 = vpop.f32.mrb[0].mxu0
        %v1013 = vadd.f32 0.0, %v1012
        %v1014 = vpop.f32.mrb[0].mxu0
        %1015 = vmatprep.mubr.bf16.mxu0 0
        %1016 = vmatmul.mubr.bf16.gmra.mrb[0].mxu0 %v962
        %v1017 = vpop.f32.mrb[0].mxu0
        %v1018 = vadd.f32 0.0, %v1017
        %v1019 = vpop.f32.mrb[0].mxu0
        %v1020 = vpop.f32.mrb[0].mxu0
        %v1021 = vadd.f32 0.0, %v1020
        %v1022 = vpop.f32.mrb[0].mxu0
        %1023 = vmatprep.mubr.bf16.mxu0 0
        %1024 = vmatmul.mubr.bf16.gmra.mrb[0].mxu0 %v965
        %v1025 = vpop.f32.mrb[0].mxu0
        %v1026 = vadd.f32 0.0, %v1025
        %v1027 = vpop.f32.mrb[0].mxu0
        %v1028 = vpop.f32.mrb[0].mxu0
        %v1029 = vadd.f32 0.0, %v1028
        %v1030 = vpop.f32.mrb[0].mxu0
        %1031 = vdwg.mxu0
        %v1032 = vadd.f32 %v862, %v1002
        %v1033 = vadd.f32 %v863, %v1005
        %v1034 = vadd.f32 %v864, %v1010
        %v1035 = vadd.f32 %v865, %v1013
        %v1036 = vadd.f32 %v866, %v1018
        %v1037 = vadd.f32 %v867, %v1021
        %v1038 = vadd.f32 %v868, %v1026
        %v1039 = vadd.f32 %v869, %v1029
        %v1040 = vpack.c.bf16 %v734, %v732
        %v1041 = vpack.c.bf16 %v738, %v736
        %v1042 = vpack.c.bf16 %v742, %v740
        %v1043 = vpack.c.bf16 %v746, %v744
        %s1044 = scalar_lea.vmem %s1, 192
        %v1045 = vld [vmem:[%s1044] sm:$0xf]
        %v1046 = vld [vmem:[%s1044 + $0x4] sm:$0xf]
        %v1047 = vld [vmem:[%s1044 + $0x8] sm:$0xf]
        %v1048 = vld [vmem:[%s1044 + $0xc] sm:$0xf]
        %v1049 = vld [vmem:[%s1044 + $0x10] sm:$0xf]
        %v1050 = vld [vmem:[%s1044 + $0x14] sm:$0xf]
        %v1051 = vld [vmem:[%s1044 + $0x18] sm:$0xf]
        %v1052 = vld [vmem:[%s1044 + $0x1c] sm:$0xf]
        %v1061 = vunpack.c.l.b16 %v1045
        %v1062 = vunpack.c.l.b16 %v1046
        %v1063 = vunpack.c.l.b16 %v1047
        %v1064 = vunpack.c.l.b16 %v1048
        %v1065 = vunpack.c.l.b16 %v1049
        %v1066 = vunpack.c.l.b16 %v1050
        %v1067 = vunpack.c.l.b16 %v1051
        %v1068 = vunpack.c.l.b16 %v1052
        %v1069 = vpack.c.b16 %v1062, %v1061
        %v1070 = vpack.c.b16 %v1064, %v1063
        %v1071 = vpack.c.b16 %v1066, %v1065
        %v1072 = vpack.c.b16 %v1068, %v1067
        %v1078 = vsel %vm282, %v1040, 0
        %v1081 = vsel %vm282, %v1041, 0
        %v1084 = vsel %vm282, %v1042, 0
        %v1087 = vsel %vm282, %v1043, 0
        %1089 = vmatprep.subr.bf16.mxu0 0
        %1090 = vmatpush1.bf16.msra.mxu0 %v1069
        %1091 = vmatprep.subr.bf16.mxu0 0
        %1092 = vmatpush1.bf16.msra.mxu0 %v1070
        %1093 = vmatprep.subr.bf16.mxu0 0
        %1094 = vmatpush1.bf16.msra.mxu0 %v1071
        %1095 = vmatprep.subr.bf16.mxu0 0
        %1096 = vmatpush1.bf16.msra.mxu0 %v1072
        %1097 = vmatprep.subr.bf16.mxu0 0
        %1098 = vmatpush1.bf16.msra.mxu0 0
        %1099 = vmatprep.subr.bf16.mxu0 0
        %1100 = vmatpush1.bf16.msra.mxu0 0
        %1101 = vmatprep.subr.bf16.mxu0 0
        %1102 = vmatpush1.bf16.msra.mxu0 0
        %1103 = vmatprep.subr.bf16.mxu0 0
        %1104 = vmatpush1.bf16.msra.mxu0 0
        %1105 = vmatprep.subr.bf16.mxu0 0
        %1106 = vmatpush1.bf16.msra.mxu0 0
        %1107 = vmatprep.subr.bf16.mxu0 0
        %1108 = vmatpush1.bf16.msra.mxu0 0
        %1109 = vmatprep.subr.bf16.mxu0 0
        %1110 = vmatpush1.bf16.msra.mxu0 0
        %1111 = vmatprep.subr.bf16.mxu0 0
        %1112 = vmatpush1.bf16.msra.mxu0 0
        %1113 = vmatprep.subr.bf16.mxu0 0
        %1114 = vmatpush1.bf16.msra.mxu0 0
        %1115 = vmatprep.subr.bf16.mxu0 0
        %1116 = vmatpush1.bf16.msra.mxu0 0
        %1117 = vmatprep.subr.bf16.mxu0 0
        %1118 = vmatpush1.bf16.msra.mxu0 0
        %1119 = vmatprep.subr.bf16.mxu0 0
        %1120 = vmatpush1.bf16.msra.mxu0 0
        %1121 = vmatprep.mubr.bf16.mxu0 0
        %1122 = vmatmul.mubr.bf16.gmra.mrb[0].mxu0 %v1078
        %v1123 = vpop.f32.mrb[0].mxu0
        %v1124 = vadd.f32 0.0, %v1123
        %v1125 = vpop.f32.mrb[0].mxu0
        %v1126 = vpop.f32.mrb[0].mxu0
        %v1127 = vadd.f32 0.0, %v1126
        %v1128 = vpop.f32.mrb[0].mxu0
        %1129 = vmatprep.mubr.bf16.mxu0 0
        %1130 = vmatmul.mubr.bf16.gmra.mrb[0].mxu0 %v1081
        %v1131 = vpop.f32.mrb[0].mxu0
        %v1132 = vadd.f32 0.0, %v1131
        %v1133 = vpop.f32.mrb[0].mxu0
        %v1134 = vpop.f32.mrb[0].mxu0
        %v1135 = vadd.f32 0.0, %v1134
        %v1136 = vpop.f32.mrb[0].mxu0
        %1137 = vmatprep.mubr.bf16.mxu0 0
        %1138 = vmatmul.mubr.bf16.gmra.mrb[0].mxu0 %v1084
        %v1139 = vpop.f32.mrb[0].mxu0
        %v1140 = vadd.f32 0.0, %v1139
        %v1141 = vpop.f32.mrb[0].mxu0
        %v1142 = vpop.f32.mrb[0].mxu0
        %v1143 = vadd.f32 0.0, %v1142
        %v1144 = vpop.f32.mrb[0].mxu0
        %1145 = vmatprep.mubr.bf16.mxu0 0
        %1146 = vmatmul.mubr.bf16.gmra.mrb[0].mxu0 %v1087
        %v1147 = vpop.f32.mrb[0].mxu0
        %v1148 = vadd.f32 0.0, %v1147
        %v1149 = vpop.f32.mrb[0].mxu0
        %v1150 = vpop.f32.mrb[0].mxu0
        %v1151 = vadd.f32 0.0, %v1150
        %v1152 = vpop.f32.mrb[0].mxu0
        %1153 = vdwg.mxu0
        %v1154 = vadd.f32 %v1032, %v1124
        %v1155 = vadd.f32 %v1033, %v1127
        %v1156 = vadd.f32 %v1034, %v1132
        %v1157 = vadd.f32 %v1035, %v1135
        %v1158 = vadd.f32 %v1036, %v1140
        %v1159 = vadd.f32 %v1037, %v1143
        %v1160 = vadd.f32 %v1038, %v1148
        %v1161 = vadd.f32 %v1039, %v1151
        %v1164 = vrot.slane %v746, 1
        %v1165 = vrot.slane %v747, 1
        %v1166 = vsel %vm212, %v1164, %v1165
        %v1168 = vpack.c.bf16 %v894, %v891
        %v1169 = vpack.c.bf16 %v900, %v897
        %v1170 = vpack.c.bf16 %v906, %v903
        %v1171 = vpack.c.bf16 %v1166, %v909
        %s1172 = scalar_lea.vmem %s1, 224
        %v1173 = vld [vmem:[%s1172] sm:$0xf]
        %v1174 = vld [vmem:[%s1172 + $0x4] sm:$0xf]
        %v1175 = vld [vmem:[%s1172 + $0x8] sm:$0xf]
        %v1176 = vld [vmem:[%s1172 + $0xc] sm:$0xf]
        %v1177 = vld [vmem:[%s1172 + $0x10] sm:$0xf]
        %v1178 = vld [vmem:[%s1172 + $0x14] sm:$0xf]
        %v1179 = vld [vmem:[%s1172 + $0x18] sm:$0xf]
        %v1180 = vld [vmem:[%s1172 + $0x1c] sm:$0xf]
        %v1189 = vunpack.c.l.b16 %v1173
        %v1190 = vunpack.c.l.b16 %v1174
        %v1191 = vunpack.c.l.b16 %v1175
        %v1192 = vunpack.c.l.b16 %v1176
        %v1193 = vunpack.c.l.b16 %v1177
        %v1194 = vunpack.c.l.b16 %v1178
        %v1195 = vunpack.c.l.b16 %v1179
        %v1196 = vunpack.c.l.b16 %v1180
        %v1197 = vpack.c.b16 %v1190, %v1189
        %v1198 = vpack.c.b16 %v1192, %v1191
        %v1199 = vpack.c.b16 %v1194, %v1193
        %v1200 = vpack.c.b16 %v1196, %v1195
        %v1206 = vsel %vm282, %v1168, 0
        %v1209 = vsel %vm282, %v1169, 0
        %v1212 = vsel %vm282, %v1170, 0
        %v1215 = vsel %vm282, %v1171, 0
        %1217 = vmatprep.subr.bf16.mxu0 0
        %1218 = vmatpush1.bf16.msra.mxu0 %v1197
        %1219 = vmatprep.subr.bf16.mxu0 0
        %1220 = vmatpush1.bf16.msra.mxu0 %v1198
        %1221 = vmatprep.subr.bf16.mxu0 0
        %1222 = vmatpush1.bf16.msra.mxu0 %v1199
        %1223 = vmatprep.subr.bf16.mxu0 0
        %1224 = vmatpush1.bf16.msra.mxu0 %v1200
        %1225 = vmatprep.subr.bf16.mxu0 0
        %1226 = vmatpush1.bf16.msra.mxu0 0
        %1227 = vmatprep.subr.bf16.mxu0 0
        %1228 = vmatpush1.bf16.msra.mxu0 0
        %1229 = vmatprep.subr.bf16.mxu0 0
        %1230 = vmatpush1.bf16.msra.mxu0 0
        %1231 = vmatprep.subr.bf16.mxu0 0
        %1232 = vmatpush1.bf16.msra.mxu0 0
        %1233 = vmatprep.subr.bf16.mxu0 0
        %1234 = vmatpush1.bf16.msra.mxu0 0
        %1235 = vmatprep.subr.bf16.mxu0 0
        %1236 = vmatpush1.bf16.msra.mxu0 0
        %1237 = vmatprep.subr.bf16.mxu0 0
        %1238 = vmatpush1.bf16.msra.mxu0 0
        %1239 = vmatprep.subr.bf16.mxu0 0
        %1240 = vmatpush1.bf16.msra.mxu0 0
        %1241 = vmatprep.subr.bf16.mxu0 0
        %1242 = vmatpush1.bf16.msra.mxu0 0
        %1243 = vmatprep.subr.bf16.mxu0 0
        %1244 = vmatpush1.bf16.msra.mxu0 0
        %1245 = vmatprep.subr.bf16.mxu0 0
        %1246 = vmatpush1.bf16.msra.mxu0 0
        %1247 = vmatprep.subr.bf16.mxu0 0
        %1248 = vmatpush1.bf16.msra.mxu0 0
        %1249 = vmatprep.mubr.bf16.mxu0 0
        %1250 = vmatmul.mubr.bf16.gmra.mrb[0].mxu0 %v1206
        %v1251 = vpop.f32.mrb[0].mxu0
        %v1252 = vadd.f32 0.0, %v1251
        %v1253 = vpop.f32.mrb[0].mxu0
        %v1254 = vpop.f32.mrb[0].mxu0
        %v1255 = vadd.f32 0.0, %v1254
        %v1256 = vpop.f32.mrb[0].mxu0
        %1257 = vmatprep.mubr.bf16.mxu0 0
        %1258 = vmatmul.mubr.bf16.gmra.mrb[0].mxu0 %v1209
        %v1259 = vpop.f32.mrb[0].mxu0
        %v1260 = vadd.f32 0.0, %v1259
        %v1261 = vpop.f32.mrb[0].mxu0
        %v1262 = vpop.f32.mrb[0].mxu0
        %v1263 = vadd.f32 0.0, %v1262
        %v1264 = vpop.f32.mrb[0].mxu0
        %1265 = vmatprep.mubr.bf16.mxu0 0
        %1266 = vmatmul.mubr.bf16.gmra.mrb[0].mxu0 %v1212
        %v1267 = vpop.f32.mrb[0].mxu0
        %v1268 = vadd.f32 0.0, %v1267
        %v1269 = vpop.f32.mrb[0].mxu0
        %v1270 = vpop.f32.mrb[0].mxu0
        %v1271 = vadd.f32 0.0, %v1270
        %v1272 = vpop.f32.mrb[0].mxu0
        %1273 = vmatprep.mubr.bf16.mxu0 0
        %1274 = vmatmul.mubr.bf16.gmra.mrb[0].mxu0 %v1215
        %v1275 = vpop.f32.mrb[0].mxu0
        %v1276 = vadd.f32 0.0, %v1275
        %v1277 = vpop.f32.mrb[0].mxu0
        %v1278 = vpop.f32.mrb[0].mxu0
        %v1279 = vadd.f32 0.0, %v1278
        %v1280 = vpop.f32.mrb[0].mxu0
        %1281 = vdwg.mxu0
        %v1282 = vadd.f32 %v1154, %v1252
        %v1283 = vadd.f32 %v1155, %v1255
        %v1284 = vadd.f32 %v1156, %v1260
        %v1285 = vadd.f32 %v1157, %v1263
        %v1286 = vadd.f32 %v1158, %v1268
        %v1287 = vadd.f32 %v1159, %v1271
        %v1288 = vadd.f32 %v1160, %v1276
        %v1289 = vadd.f32 %v1161, %v1279
        %s1290 = scalar_lea.vmem %s145, 144
        %v1291 = vld [vmem:[%s1290] sm:$0xf]
        %v1292 = vld [vmem:[%s1290 + $0x4] sm:$0x1]
        %v1293 = vld [vmem:[%s1290 + $0x8] sm:$0xf]
        %v1294 = vld [vmem:[%s1290 + $0xc] sm:$0x1]
        %v1295 = vld [vmem:[%s1290 + $0x10] sm:$0xf]
        %v1296 = vld [vmem:[%s1290 + $0x14] sm:$0x1]
        %v1297 = vld [vmem:[%s1290 + $0x18] sm:$0xf]
        %v1298 = vld [vmem:[%s1290 + $0x1c] sm:$0x1]
        %v1299 = vld [vmem:[%s1290 + $0x20] sm:$0xf]
        %v1300 = vld [vmem:[%s1290 + $0x24] sm:$0x1]
        %v1301 = vld [vmem:[%s1290 + $0x28] sm:$0xf]
        %v1302 = vld [vmem:[%s1290 + $0x2c] sm:$0x1]
        %v1303 = vld [vmem:[%s1290 + $0x30] sm:$0xf]
        %v1304 = vld [vmem:[%s1290 + $0x34] sm:$0x1]
        %v1305 = vld [vmem:[%s1290 + $0x38] sm:$0xf]
        %v1306 = vld [vmem:[%s1290 + $0x3c] sm:$0x1]
        %v1307 = vld [vmem:[%s1290 + $0x40] sm:$0xf]
        %v1308 = vld [vmem:[%s1290 + $0x44] sm:$0x1]
        %v1309 = vunpack.c.l.bf16 %v1291
        %v1310 = vunpack.c.l.bf16 %v1292
        %v1311 = vunpack.c.l.bf16 %v1293
        %v1312 = vunpack.c.l.bf16 %v1294
        %v1313 = vunpack.c.l.bf16 %v1295
        %v1314 = vunpack.c.l.bf16 %v1296
        %v1315 = vunpack.c.l.bf16 %v1297
        %v1316 = vunpack.c.l.bf16 %v1298
        %v1317 = vunpack.c.l.bf16 %v1299
        %v1318 = vunpack.c.l.bf16 %v1300
        %v1319 = vunpack.c.l.bf16 %v1301
        %v1320 = vunpack.c.l.bf16 %v1302
        %v1321 = vunpack.c.l.bf16 %v1303
        %v1322 = vunpack.c.l.bf16 %v1304
        %v1323 = vunpack.c.l.bf16 %v1305
        %v1324 = vunpack.c.l.bf16 %v1306
        %v1325 = vunpack.c.l.bf16 %v1307
        %v1326 = vunpack.c.l.bf16 %v1308
        %v1327 = vpack.c.bf16 %v1311, %v1309
        %v1328 = vpack.c.bf16 %v1315, %v1313
        %v1329 = vpack.c.bf16 %v1319, %v1317
        %v1330 = vpack.c.bf16 %v1323, %v1321
        %s1331 = scalar_lea.vmem %s1, 256
        %v1332 = vld [vmem:[%s1331] sm:$0xf]
        %v1333 = vld [vmem:[%s1331 + $0x4] sm:$0xf]
        %v1334 = vld [vmem:[%s1331 + $0x8] sm:$0xf]
        %v1335 = vld [vmem:[%s1331 + $0xc] sm:$0xf]
        %v1336 = vld [vmem:[%s1331 + $0x10] sm:$0xf]
        %v1337 = vld [vmem:[%s1331 + $0x14] sm:$0xf]
        %v1338 = vld [vmem:[%s1331 + $0x18] sm:$0xf]
        %v1339 = vld [vmem:[%s1331 + $0x1c] sm:$0xf]
        %v1348 = vunpack.c.l.b16 %v1332
        %v1349 = vunpack.c.l.b16 %v1333
        %v1350 = vunpack.c.l.b16 %v1334
        %v1351 = vunpack.c.l.b16 %v1335
        %v1352 = vunpack.c.l.b16 %v1336
        %v1353 = vunpack.c.l.b16 %v1337
        %v1354 = vunpack.c.l.b16 %v1338
        %v1355 = vunpack.c.l.b16 %v1339
        %v1356 = vpack.c.b16 %v1349, %v1348
        %v1357 = vpack.c.b16 %v1351, %v1350
        %v1358 = vpack.c.b16 %v1353, %v1352
        %v1359 = vpack.c.b16 %v1355, %v1354
        %v1365 = vsel %vm282, %v1327, 0
        %v1368 = vsel %vm282, %v1328, 0
        %v1371 = vsel %vm282, %v1329, 0
        %v1374 = vsel %vm282, %v1330, 0
        %1376 = vmatprep.subr.bf16.mxu0 0
        %1377 = vmatpush1.bf16.msra.mxu0 %v1356
        %1378 = vmatprep.subr.bf16.mxu0 0
        %1379 = vmatpush1.bf16.msra.mxu0 %v1357
        %1380 = vmatprep.subr.bf16.mxu0 0
        %1381 = vmatpush1.bf16.msra.mxu0 %v1358
        %1382 = vmatprep.subr.bf16.mxu0 0
        %1383 = vmatpush1.bf16.msra.mxu0 %v1359
        %1384 = vmatprep.subr.bf16.mxu0 0
        %1385 = vmatpush1.bf16.msra.mxu0 0
        %1386 = vmatprep.subr.bf16.mxu0 0
        %1387 = vmatpush1.bf16.msra.mxu0 0
        %1388 = vmatprep.subr.bf16.mxu0 0
        %1389 = vmatpush1.bf16.msra.mxu0 0
        %1390 = vmatprep.subr.bf16.mxu0 0
        %1391 = vmatpush1.bf16.msra.mxu0 0
        %1392 = vmatprep.subr.bf16.mxu0 0
        %1393 = vmatpush1.bf16.msra.mxu0 0
        %1394 = vmatprep.subr.bf16.mxu0 0
        %1395 = vmatpush1.bf16.msra.mxu0 0
        %1396 = vmatprep.subr.bf16.mxu0 0
        %1397 = vmatpush1.bf16.msra.mxu0 0
        %1398 = vmatprep.subr.bf16.mxu0 0
        %1399 = vmatpush1.bf16.msra.mxu0 0
        %1400 = vmatprep.subr.bf16.mxu0 0
        %1401 = vmatpush1.bf16.msra.mxu0 0
        %1402 = vmatprep.subr.bf16.mxu0 0
        %1403 = vmatpush1.bf16.msra.mxu0 0
        %1404 = vmatprep.subr.bf16.mxu0 0
        %1405 = vmatpush1.bf16.msra.mxu0 0
        %1406 = vmatprep.subr.bf16.mxu0 0
        %1407 = vmatpush1.bf16.msra.mxu0 0
        %1408 = vmatprep.mubr.bf16.mxu0 0
        %1409 = vmatmul.mubr.bf16.gmra.mrb[0].mxu0 %v1365
        %v1410 = vpop.f32.mrb[0].mxu0
        %v1411 = vadd.f32 0.0, %v1410
        %v1412 = vpop.f32.mrb[0].mxu0
        %v1413 = vpop.f32.mrb[0].mxu0
        %v1414 = vadd.f32 0.0, %v1413
        %v1415 = vpop.f32.mrb[0].mxu0
        %1416 = vmatprep.mubr.bf16.mxu0 0
        %1417 = vmatmul.mubr.bf16.gmra.mrb[0].mxu0 %v1368
        %v1418 = vpop.f32.mrb[0].mxu0
        %v1419 = vadd.f32 0.0, %v1418
        %v1420 = vpop.f32.mrb[0].mxu0
        %v1421 = vpop.f32.mrb[0].mxu0
        %v1422 = vadd.f32 0.0, %v1421
        %v1423 = vpop.f32.mrb[0].mxu0
        %1424 = vmatprep.mubr.bf16.mxu0 0
        %1425 = vmatmul.mubr.bf16.gmra.mrb[0].mxu0 %v1371
        %v1426 = vpop.f32.mrb[0].mxu0
        %v1427 = vadd.f32 0.0, %v1426
        %v1428 = vpop.f32.mrb[0].mxu0
        %v1429 = vpop.f32.mrb[0].mxu0
        %v1430 = vadd.f32 0.0, %v1429
        %v1431 = vpop.f32.mrb[0].mxu0
        %1432 = vmatprep.mubr.bf16.mxu0 0
        %1433 = vmatmul.mubr.bf16.gmra.mrb[0].mxu0 %v1374
        %v1434 = vpop.f32.mrb[0].mxu0
        %v1435 = vadd.f32 0.0, %v1434
        %v1436 = vpop.f32.mrb[0].mxu0
        %v1437 = vpop.f32.mrb[0].mxu0
        %v1438 = vadd.f32 0.0, %v1437
        %v1439 = vpop.f32.mrb[0].mxu0
        %1440 = vdwg.mxu0
        %v1441 = vadd.f32 %v1282, %v1411
        %v1442 = vadd.f32 %v1283, %v1414
        %v1443 = vadd.f32 %v1284, %v1419
        %v1444 = vadd.f32 %v1285, %v1422
        %v1445 = vadd.f32 %v1286, %v1427
        %v1446 = vadd.f32 %v1287, %v1430
        %v1447 = vadd.f32 %v1288, %v1435
        %v1448 = vadd.f32 %v1289, %v1438
        %v1465 = vrot.slane %v1309, 1
        %v1466 = vrot.slane %v1310, 1
        %v1467 = vsel %vm212, %v1465, %v1466
        %v1468 = vrot.slane %v1311, 1
        %v1469 = vrot.slane %v1312, 1
        %v1470 = vsel %vm212, %v1468, %v1469
        %v1471 = vrot.slane %v1313, 1
        %v1472 = vrot.slane %v1314, 1
        %v1473 = vsel %vm212, %v1471, %v1472
        %v1474 = vrot.slane %v1315, 1
        %v1475 = vrot.slane %v1316, 1
        %v1476 = vsel %vm212, %v1474, %v1475
        %v1477 = vrot.slane %v1317, 1
        %v1478 = vrot.slane %v1318, 1
        %v1479 = vsel %vm212, %v1477, %v1478
        %v1480 = vrot.slane %v1319, 1
        %v1481 = vrot.slane %v1320, 1
        %v1482 = vsel %vm212, %v1480, %v1481
        %v1483 = vrot.slane %v1321, 1
        %v1484 = vrot.slane %v1322, 1
        %v1485 = vsel %vm212, %v1483, %v1484
        %v1486 = vrot.slane %v1323, 1
        %v1487 = vrot.slane %v1324, 1
        %v1488 = vsel %vm212, %v1486, %v1487
        %v1497 = vpack.c.bf16 %v1470, %v1467
        %v1498 = vpack.c.bf16 %v1476, %v1473
        %v1499 = vpack.c.bf16 %v1482, %v1479
        %v1500 = vpack.c.bf16 %v1488, %v1485
        %s1501 = scalar_lea.vmem %s1, 288
        %v1502 = vld [vmem:[%s1501] sm:$0xf]
        %v1503 = vld [vmem:[%s1501 + $0x4] sm:$0xf]
        %v1504 = vld [vmem:[%s1501 + $0x8] sm:$0xf]
        %v1505 = vld [vmem:[%s1501 + $0xc] sm:$0xf]
        %v1506 = vld [vmem:[%s1501 + $0x10] sm:$0xf]
        %v1507 = vld [vmem:[%s1501 + $0x14] sm:$0xf]
        %v1508 = vld [vmem:[%s1501 + $0x18] sm:$0xf]
        %v1509 = vld [vmem:[%s1501 + $0x1c] sm:$0xf]
        %v1518 = vunpack.c.l.b16 %v1502
        %v1519 = vunpack.c.l.b16 %v1503
        %v1520 = vunpack.c.l.b16 %v1504
        %v1521 = vunpack.c.l.b16 %v1505
        %v1522 = vunpack.c.l.b16 %v1506
        %v1523 = vunpack.c.l.b16 %v1507
        %v1524 = vunpack.c.l.b16 %v1508
        %v1525 = vunpack.c.l.b16 %v1509
        %v1526 = vpack.c.b16 %v1519, %v1518
        %v1527 = vpack.c.b16 %v1521, %v1520
        %v1528 = vpack.c.b16 %v1523, %v1522
        %v1529 = vpack.c.b16 %v1525, %v1524
        %v1535 = vsel %vm282, %v1497, 0
        %v1538 = vsel %vm282, %v1498, 0
        %v1541 = vsel %vm282, %v1499, 0
        %v1544 = vsel %vm282, %v1500, 0
        %1546 = vmatprep.subr.bf16.mxu0 0
        %1547 = vmatpush1.bf16.msra.mxu0 %v1526
        %1548 = vmatprep.subr.bf16.mxu0 0
        %1549 = vmatpush1.bf16.msra.mxu0 %v1527
        %1550 = vmatprep.subr.bf16.mxu0 0
        %1551 = vmatpush1.bf16.msra.mxu0 %v1528
        %1552 = vmatprep.subr.bf16.mxu0 0
        %1553 = vmatpush1.bf16.msra.mxu0 %v1529
        %1554 = vmatprep.subr.bf16.mxu0 0
        %1555 = vmatpush1.bf16.msra.mxu0 0
        %1556 = vmatprep.subr.bf16.mxu0 0
        %1557 = vmatpush1.bf16.msra.mxu0 0
        %1558 = vmatprep.subr.bf16.mxu0 0
        %1559 = vmatpush1.bf16.msra.mxu0 0
        %1560 = vmatprep.subr.bf16.mxu0 0
        %1561 = vmatpush1.bf16.msra.mxu0 0
        %1562 = vmatprep.subr.bf16.mxu0 0
        %1563 = vmatpush1.bf16.msra.mxu0 0
        %1564 = vmatprep.subr.bf16.mxu0 0
        %1565 = vmatpush1.bf16.msra.mxu0 0
        %1566 = vmatprep.subr.bf16.mxu0 0
        %1567 = vmatpush1.bf16.msra.mxu0 0
        %1568 = vmatprep.subr.bf16.mxu0 0
        %1569 = vmatpush1.bf16.msra.mxu0 0
        %1570 = vmatprep.subr.bf16.mxu0 0
        %1571 = vmatpush1.bf16.msra.mxu0 0
        %1572 = vmatprep.subr.bf16.mxu0 0
        %1573 = vmatpush1.bf16.msra.mxu0 0
        %1574 = vmatprep.subr.bf16.mxu0 0
        %1575 = vmatpush1.bf16.msra.mxu0 0
        %1576 = vmatprep.subr.bf16.mxu0 0
        %1577 = vmatpush1.bf16.msra.mxu0 0
        %1578 = vmatprep.mubr.bf16.mxu0 0
        %1579 = vmatmul.mubr.bf16.gmra.mrb[0].mxu0 %v1535
        %v1580 = vpop.f32.mrb[0].mxu0
        %v1581 = vadd.f32 0.0, %v1580
        %v1582 = vpop.f32.mrb[0].mxu0
        %v1583 = vpop.f32.mrb[0].mxu0
        %v1584 = vadd.f32 0.0, %v1583
        %v1585 = vpop.f32.mrb[0].mxu0
        %1586 = vmatprep.mubr.bf16.mxu0 0
        %1587 = vmatmul.mubr.bf16.gmra.mrb[0].mxu0 %v1538
        %v1588 = vpop.f32.mrb[0].mxu0
        %v1589 = vadd.f32 0.0, %v1588
        %v1590 = vpop.f32.mrb[0].mxu0
        %v1591 = vpop.f32.mrb[0].mxu0
        %v1592 = vadd.f32 0.0, %v1591
        %v1593 = vpop.f32.mrb[0].mxu0
        %1594 = vmatprep.mubr.bf16.mxu0 0
        %1595 = vmatmul.mubr.bf16.gmra.mrb[0].mxu0 %v1541
        %v1596 = vpop.f32.mrb[0].mxu0
        %v1597 = vadd.f32 0.0, %v1596
        %v1598 = vpop.f32.mrb[0].mxu0
        %v1599 = vpop.f32.mrb[0].mxu0
        %v1600 = vadd.f32 0.0, %v1599
        %v1601 = vpop.f32.mrb[0].mxu0
        %1602 = vmatprep.mubr.bf16.mxu0 0
        %1603 = vmatmul.mubr.bf16.gmra.mrb[0].mxu0 %v1544
        %v1604 = vpop.f32.mrb[0].mxu0
        %v1605 = vadd.f32 0.0, %v1604
        %v1606 = vpop.f32.mrb[0].mxu0
        %v1607 = vpop.f32.mrb[0].mxu0
        %v1608 = vadd.f32 0.0, %v1607
        %v1609 = vpop.f32.mrb[0].mxu0
        %1610 = vdwg.mxu0
        %v1611 = vadd.f32 %v1441, %v1581
        %v1612 = vadd.f32 %v1442, %v1584
        %v1613 = vadd.f32 %v1443, %v1589
        %v1614 = vadd.f32 %v1444, %v1592
        %v1615 = vadd.f32 %v1445, %v1597
        %v1616 = vadd.f32 %v1446, %v1600
        %v1617 = vadd.f32 %v1447, %v1605
        %v1618 = vadd.f32 %v1448, %v1608
        %v1619 = vpack.c.bf16 %v1313, %v1311
        %v1620 = vpack.c.bf16 %v1317, %v1315
        %v1621 = vpack.c.bf16 %v1321, %v1319
        %v1622 = vpack.c.bf16 %v1325, %v1323
        %s1623 = scalar_lea.vmem %s1, 320
        %v1624 = vld [vmem:[%s1623] sm:$0xf]
        %v1625 = vld [vmem:[%s1623 + $0x4] sm:$0xf]
        %v1626 = vld [vmem:[%s1623 + $0x8] sm:$0xf]
        %v1627 = vld [vmem:[%s1623 + $0xc] sm:$0xf]
        %v1628 = vld [vmem:[%s1623 + $0x10] sm:$0xf]
        %v1629 = vld [vmem:[%s1623 + $0x14] sm:$0xf]
        %v1630 = vld [vmem:[%s1623 + $0x18] sm:$0xf]
        %v1631 = vld [vmem:[%s1623 + $0x1c] sm:$0xf]
        %v1640 = vunpack.c.l.b16 %v1624
        %v1641 = vunpack.c.l.b16 %v1625
        %v1642 = vunpack.c.l.b16 %v1626
        %v1643 = vunpack.c.l.b16 %v1627
        %v1644 = vunpack.c.l.b16 %v1628
        %v1645 = vunpack.c.l.b16 %v1629
        %v1646 = vunpack.c.l.b16 %v1630
        %v1647 = vunpack.c.l.b16 %v1631
        %v1648 = vpack.c.b16 %v1641, %v1640
        %v1649 = vpack.c.b16 %v1643, %v1642
        %v1650 = vpack.c.b16 %v1645, %v1644
        %v1651 = vpack.c.b16 %v1647, %v1646
        %v1657 = vsel %vm282, %v1619, 0
        %v1660 = vsel %vm282, %v1620, 0
        %v1663 = vsel %vm282, %v1621, 0
        %v1666 = vsel %vm282, %v1622, 0
        %1668 = vmatprep.subr.bf16.mxu0 0
        %1669 = vmatpush1.bf16.msra.mxu0 %v1648
        %1670 = vmatprep.subr.bf16.mxu0 0
        %1671 = vmatpush1.bf16.msra.mxu0 %v1649
        %1672 = vmatprep.subr.bf16.mxu0 0
        %1673 = vmatpush1.bf16.msra.mxu0 %v1650
        %1674 = vmatprep.subr.bf16.mxu0 0
        %1675 = vmatpush1.bf16.msra.mxu0 %v1651
        %1676 = vmatprep.subr.bf16.mxu0 0
        %1677 = vmatpush1.bf16.msra.mxu0 0
        %1678 = vmatprep.subr.bf16.mxu0 0
        %1679 = vmatpush1.bf16.msra.mxu0 0
        %1680 = vmatprep.subr.bf16.mxu0 0
        %1681 = vmatpush1.bf16.msra.mxu0 0
        %1682 = vmatprep.subr.bf16.mxu0 0
        %1683 = vmatpush1.bf16.msra.mxu0 0
        %1684 = vmatprep.subr.bf16.mxu0 0
        %1685 = vmatpush1.bf16.msra.mxu0 0
        %1686 = vmatprep.subr.bf16.mxu0 0
        %1687 = vmatpush1.bf16.msra.mxu0 0
        %1688 = vmatprep.subr.bf16.mxu0 0
        %1689 = vmatpush1.bf16.msra.mxu0 0
        %1690 = vmatprep.subr.bf16.mxu0 0
        %1691 = vmatpush1.bf16.msra.mxu0 0
        %1692 = vmatprep.subr.bf16.mxu0 0
        %1693 = vmatpush1.bf16.msra.mxu0 0
        %1694 = vmatprep.subr.bf16.mxu0 0
        %1695 = vmatpush1.bf16.msra.mxu0 0
        %1696 = vmatprep.subr.bf16.mxu0 0
        %1697 = vmatpush1.bf16.msra.mxu0 0
        %1698 = vmatprep.subr.bf16.mxu0 0
        %1699 = vmatpush1.bf16.msra.mxu0 0
        %1700 = vmatprep.mubr.bf16.mxu0 0
        %1701 = vmatmul.mubr.bf16.gmra.mrb[0].mxu0 %v1657
        %v1702 = vpop.f32.mrb[0].mxu0
        %v1703 = vadd.f32 0.0, %v1702
        %v1704 = vpop.f32.mrb[0].mxu0
        %v1705 = vpop.f32.mrb[0].mxu0
        %v1706 = vadd.f32 0.0, %v1705
        %v1707 = vpop.f32.mrb[0].mxu0
        %1708 = vmatprep.mubr.bf16.mxu0 0
        %1709 = vmatmul.mubr.bf16.gmra.mrb[0].mxu0 %v1660
        %v1710 = vpop.f32.mrb[0].mxu0
        %v1711 = vadd.f32 0.0, %v1710
        %v1712 = vpop.f32.mrb[0].mxu0
        %v1713 = vpop.f32.mrb[0].mxu0
        %v1714 = vadd.f32 0.0, %v1713
        %v1715 = vpop.f32.mrb[0].mxu0
        %1716 = vmatprep.mubr.bf16.mxu0 0
        %1717 = vmatmul.mubr.bf16.gmra.mrb[0].mxu0 %v1663
        %v1718 = vpop.f32.mrb[0].mxu0
        %v1719 = vadd.f32 0.0, %v1718
        %v1720 = vpop.f32.mrb[0].mxu0
        %v1721 = vpop.f32.mrb[0].mxu0
        %v1722 = vadd.f32 0.0, %v1721
        %v1723 = vpop.f32.mrb[0].mxu0
        %1724 = vmatprep.mubr.bf16.mxu0 0
        %1725 = vmatmul.mubr.bf16.gmra.mrb[0].mxu0 %v1666
        %v1726 = vpop.f32.mrb[0].mxu0
        %v1727 = vadd.f32 0.0, %v1726
        %v1728 = vpop.f32.mrb[0].mxu0
        %v1729 = vpop.f32.mrb[0].mxu0
        %v1730 = vadd.f32 0.0, %v1729
        %v1731 = vpop.f32.mrb[0].mxu0
        %1732 = vdwg.mxu0
        %v1733 = vadd.f32 %v1611, %v1703
        %v1734 = vadd.f32 %v1612, %v1706
        %v1735 = vadd.f32 %v1613, %v1711
        %v1736 = vadd.f32 %v1614, %v1714
        %v1737 = vadd.f32 %v1615, %v1719
        %v1738 = vadd.f32 %v1616, %v1722
        %v1739 = vadd.f32 %v1617, %v1727
        %v1740 = vadd.f32 %v1618, %v1730
        %v1743 = vrot.slane %v1325, 1
        %v1744 = vrot.slane %v1326, 1
        %v1745 = vsel %vm212, %v1743, %v1744
        %v1747 = vpack.c.bf16 %v1473, %v1470
        %v1748 = vpack.c.bf16 %v1479, %v1476
        %v1749 = vpack.c.bf16 %v1485, %v1482
        %v1750 = vpack.c.bf16 %v1745, %v1488
        %s1751 = scalar_lea.vmem %s1, 352
        %v1752 = vld [vmem:[%s1751] sm:$0xf]
        %v1753 = vld [vmem:[%s1751 + $0x4] sm:$0xf]
        %v1754 = vld [vmem:[%s1751 + $0x8] sm:$0xf]
        %v1755 = vld [vmem:[%s1751 + $0xc] sm:$0xf]
        %v1756 = vld [vmem:[%s1751 + $0x10] sm:$0xf]
        %v1757 = vld [vmem:[%s1751 + $0x14] sm:$0xf]
        %v1758 = vld [vmem:[%s1751 + $0x18] sm:$0xf]
        %v1759 = vld [vmem:[%s1751 + $0x1c] sm:$0xf]
        %v1768 = vunpack.c.l.b16 %v1752
        %v1769 = vunpack.c.l.b16 %v1753
        %v1770 = vunpack.c.l.b16 %v1754
        %v1771 = vunpack.c.l.b16 %v1755
        %v1772 = vunpack.c.l.b16 %v1756
        %v1773 = vunpack.c.l.b16 %v1757
        %v1774 = vunpack.c.l.b16 %v1758
        %v1775 = vunpack.c.l.b16 %v1759
        %v1776 = vpack.c.b16 %v1769, %v1768
        %v1777 = vpack.c.b16 %v1771, %v1770
        %v1778 = vpack.c.b16 %v1773, %v1772
        %v1779 = vpack.c.b16 %v1775, %v1774
        %v1785 = vsel %vm282, %v1747, 0
        %v1788 = vsel %vm282, %v1748, 0
        %v1791 = vsel %vm282, %v1749, 0
        %v1794 = vsel %vm282, %v1750, 0
        %1796 = vmatprep.subr.bf16.mxu0 0
        %1797 = vmatpush1.bf16.msra.mxu0 %v1776
        %1798 = vmatprep.subr.bf16.mxu0 0
        %1799 = vmatpush1.bf16.msra.mxu0 %v1777
        %1800 = vmatprep.subr.bf16.mxu0 0
        %1801 = vmatpush1.bf16.msra.mxu0 %v1778
        %1802 = vmatprep.subr.bf16.mxu0 0
        %1803 = vmatpush1.bf16.msra.mxu0 %v1779
        %1804 = vmatprep.subr.bf16.mxu0 0
        %1805 = vmatpush1.bf16.msra.mxu0 0
        %1806 = vmatprep.subr.bf16.mxu0 0
        %1807 = vmatpush1.bf16.msra.mxu0 0
        %1808 = vmatprep.subr.bf16.mxu0 0
        %1809 = vmatpush1.bf16.msra.mxu0 0
        %1810 = vmatprep.subr.bf16.mxu0 0
        %1811 = vmatpush1.bf16.msra.mxu0 0
        %1812 = vmatprep.subr.bf16.mxu0 0
        %1813 = vmatpush1.bf16.msra.mxu0 0
        %1814 = vmatprep.subr.bf16.mxu0 0
        %1815 = vmatpush1.bf16.msra.mxu0 0
        %1816 = vmatprep.subr.bf16.mxu0 0
        %1817 = vmatpush1.bf16.msra.mxu0 0
        %1818 = vmatprep.subr.bf16.mxu0 0
        %1819 = vmatpush1.bf16.msra.mxu0 0
        %1820 = vmatprep.subr.bf16.mxu0 0
        %1821 = vmatpush1.bf16.msra.mxu0 0
        %1822 = vmatprep.subr.bf16.mxu0 0
        %1823 = vmatpush1.bf16.msra.mxu0 0
        %1824 = vmatprep.subr.bf16.mxu0 0
        %1825 = vmatpush1.bf16.msra.mxu0 0
        %1826 = vmatprep.subr.bf16.mxu0 0
        %1827 = vmatpush1.bf16.msra.mxu0 0
        %1828 = vmatprep.mubr.bf16.mxu0 0
        %1829 = vmatmul.mubr.bf16.gmra.mrb[0].mxu0 %v1785
        %v1830 = vpop.f32.mrb[0].mxu0
        %v1831 = vadd.f32 0.0, %v1830
        %v1832 = vpop.f32.mrb[0].mxu0
        %v1833 = vpop.f32.mrb[0].mxu0
        %v1834 = vadd.f32 0.0, %v1833
        %v1835 = vpop.f32.mrb[0].mxu0
        %1836 = vmatprep.mubr.bf16.mxu0 0
        %1837 = vmatmul.mubr.bf16.gmra.mrb[0].mxu0 %v1788
        %v1838 = vpop.f32.mrb[0].mxu0
        %v1839 = vadd.f32 0.0, %v1838
        %v1840 = vpop.f32.mrb[0].mxu0
        %v1841 = vpop.f32.mrb[0].mxu0
        %v1842 = vadd.f32 0.0, %v1841
        %v1843 = vpop.f32.mrb[0].mxu0
        %1844 = vmatprep.mubr.bf16.mxu0 0
        %1845 = vmatmul.mubr.bf16.gmra.mrb[0].mxu0 %v1791
        %v1846 = vpop.f32.mrb[0].mxu0
        %v1847 = vadd.f32 0.0, %v1846
        %v1848 = vpop.f32.mrb[0].mxu0
        %v1849 = vpop.f32.mrb[0].mxu0
        %v1850 = vadd.f32 0.0, %v1849
        %v1851 = vpop.f32.mrb[0].mxu0
        %1852 = vmatprep.mubr.bf16.mxu0 0
        %1853 = vmatmul.mubr.bf16.gmra.mrb[0].mxu0 %v1794
        %v1854 = vpop.f32.mrb[0].mxu0
        %v1855 = vadd.f32 0.0, %v1854
        %v1856 = vpop.f32.mrb[0].mxu0
        %v1857 = vpop.f32.mrb[0].mxu0
        %v1858 = vadd.f32 0.0, %v1857
        %v1859 = vpop.f32.mrb[0].mxu0
        %1860 = vdwg.mxu0
        %v1861 = vadd.f32 %v1733, %v1831
        %v1862 = vadd.f32 %v1734, %v1834
        %v1863 = vadd.f32 %v1735, %v1839
        %v1864 = vadd.f32 %v1736, %v1842
        %v1865 = vadd.f32 %v1737, %v1847
        %v1866 = vadd.f32 %v1738, %v1850
        %v1867 = vadd.f32 %v1739, %v1855
        %v1868 = vadd.f32 %v1740, %v1858
        %s1869 = scalar_lea.vmem %s145, 216
        %v1870 = vld [vmem:[%s1869] sm:$0xf]
        %v1871 = vld [vmem:[%s1869 + $0x4] sm:$0x1]
        %v1872 = vld [vmem:[%s1869 + $0x8] sm:$0xf]
        %v1873 = vld [vmem:[%s1869 + $0xc] sm:$0x1]
        %v1874 = vld [vmem:[%s1869 + $0x10] sm:$0xf]
        %v1875 = vld [vmem:[%s1869 + $0x14] sm:$0x1]
        %v1876 = vld [vmem:[%s1869 + $0x18] sm:$0xf]
        %v1877 = vld [vmem:[%s1869 + $0x1c] sm:$0x1]
        %v1878 = vld [vmem:[%s1869 + $0x20] sm:$0xf]
        %v1879 = vld [vmem:[%s1869 + $0x24] sm:$0x1]
        %v1880 = vld [vmem:[%s1869 + $0x28] sm:$0xf]
        %v1881 = vld [vmem:[%s1869 + $0x2c] sm:$0x1]
        %v1882 = vld [vmem:[%s1869 + $0x30] sm:$0xf]
        %v1883 = vld [vmem:[%s1869 + $0x34] sm:$0x1]
        %v1884 = vld [vmem:[%s1869 + $0x38] sm:$0xf]
        %v1885 = vld [vmem:[%s1869 + $0x3c] sm:$0x1]
        %v1886 = vld [vmem:[%s1869 + $0x40] sm:$0xf]
        %v1887 = vld [vmem:[%s1869 + $0x44] sm:$0x1]
        %v1888 = vunpack.c.l.bf16 %v1870
        %v1889 = vunpack.c.l.bf16 %v1871
        %v1890 = vunpack.c.l.bf16 %v1872
        %v1891 = vunpack.c.l.bf16 %v1873
        %v1892 = vunpack.c.l.bf16 %v1874
        %v1893 = vunpack.c.l.bf16 %v1875
        %v1894 = vunpack.c.l.bf16 %v1876
        %v1895 = vunpack.c.l.bf16 %v1877
        %v1896 = vunpack.c.l.bf16 %v1878
        %v1897 = vunpack.c.l.bf16 %v1879
        %v1898 = vunpack.c.l.bf16 %v1880
        %v1899 = vunpack.c.l.bf16 %v1881
        %v1900 = vunpack.c.l.bf16 %v1882
        %v1901 = vunpack.c.l.bf16 %v1883
        %v1902 = vunpack.c.l.bf16 %v1884
        %v1903 = vunpack.c.l.bf16 %v1885
        %v1904 = vunpack.c.l.bf16 %v1886
        %v1905 = vunpack.c.l.bf16 %v1887
        %v1906 = vpack.c.bf16 %v1890, %v1888
        %v1907 = vpack.c.bf16 %v1894, %v1892
        %v1908 = vpack.c.bf16 %v1898, %v1896
        %v1909 = vpack.c.bf16 %v1902, %v1900
        %s1910 = scalar_lea.vmem %s1, 384
        %v1911 = vld [vmem:[%s1910] sm:$0xf]
        %v1912 = vld [vmem:[%s1910 + $0x4] sm:$0xf]
        %v1913 = vld [vmem:[%s1910 + $0x8] sm:$0xf]
        %v1914 = vld [vmem:[%s1910 + $0xc] sm:$0xf]
        %v1915 = vld [vmem:[%s1910 + $0x10] sm:$0xf]
        %v1916 = vld [vmem:[%s1910 + $0x14] sm:$0xf]
        %v1917 = vld [vmem:[%s1910 + $0x18] sm:$0xf]
        %v1918 = vld [vmem:[%s1910 + $0x1c] sm:$0xf]
        %v1927 = vunpack.c.l.b16 %v1911
        %v1928 = vunpack.c.l.b16 %v1912
        %v1929 = vunpack.c.l.b16 %v1913
        %v1930 = vunpack.c.l.b16 %v1914
        %v1931 = vunpack.c.l.b16 %v1915
        %v1932 = vunpack.c.l.b16 %v1916
        %v1933 = vunpack.c.l.b16 %v1917
        %v1934 = vunpack.c.l.b16 %v1918
        %v1935 = vpack.c.b16 %v1928, %v1927
        %v1936 = vpack.c.b16 %v1930, %v1929
        %v1937 = vpack.c.b16 %v1932, %v1931
        %v1938 = vpack.c.b16 %v1934, %v1933
        %v1944 = vsel %vm282, %v1906, 0
        %v1947 = vsel %vm282, %v1907, 0
        %v1950 = vsel %vm282, %v1908, 0
        %v1953 = vsel %vm282, %v1909, 0
        %1955 = vmatprep.subr.bf16.mxu0 0
        %1956 = vmatpush1.bf16.msra.mxu0 %v1935
        %1957 = vmatprep.subr.bf16.mxu0 0
        %1958 = vmatpush1.bf16.msra.mxu0 %v1936
        %1959 = vmatprep.subr.bf16.mxu0 0
        %1960 = vmatpush1.bf16.msra.mxu0 %v1937
        %1961 = vmatprep.subr.bf16.mxu0 0
        %1962 = vmatpush1.bf16.msra.mxu0 %v1938
        %1963 = vmatprep.subr.bf16.mxu0 0
        %1964 = vmatpush1.bf16.msra.mxu0 0
        %1965 = vmatprep.subr.bf16.mxu0 0
        %1966 = vmatpush1.bf16.msra.mxu0 0
        %1967 = vmatprep.subr.bf16.mxu0 0
        %1968 = vmatpush1.bf16.msra.mxu0 0
        %1969 = vmatprep.subr.bf16.mxu0 0
        %1970 = vmatpush1.bf16.msra.mxu0 0
        %1971 = vmatprep.subr.bf16.mxu0 0
        %1972 = vmatpush1.bf16.msra.mxu0 0
        %1973 = vmatprep.subr.bf16.mxu0 0
        %1974 = vmatpush1.bf16.msra.mxu0 0
        %1975 = vmatprep.subr.bf16.mxu0 0
        %1976 = vmatpush1.bf16.msra.mxu0 0
        %1977 = vmatprep.subr.bf16.mxu0 0
        %1978 = vmatpush1.bf16.msra.mxu0 0
        %1979 = vmatprep.subr.bf16.mxu0 0
        %1980 = vmatpush1.bf16.msra.mxu0 0
        %1981 = vmatprep.subr.bf16.mxu0 0
        %1982 = vmatpush1.bf16.msra.mxu0 0
        %1983 = vmatprep.subr.bf16.mxu0 0
        %1984 = vmatpush1.bf16.msra.mxu0 0
        %1985 = vmatprep.subr.bf16.mxu0 0
        %1986 = vmatpush1.bf16.msra.mxu0 0
        %1987 = vmatprep.mubr.bf16.mxu0 0
        %1988 = vmatmul.mubr.bf16.gmra.mrb[0].mxu0 %v1944
        %v1989 = vpop.f32.mrb[0].mxu0
        %v1990 = vadd.f32 0.0, %v1989
        %v1991 = vpop.f32.mrb[0].mxu0
        %v1992 = vpop.f32.mrb[0].mxu0
        %v1993 = vadd.f32 0.0, %v1992
        %v1994 = vpop.f32.mrb[0].mxu0
        %1995 = vmatprep.mubr.bf16.mxu0 0
        %1996 = vmatmul.mubr.bf16.gmra.mrb[0].mxu0 %v1947
        %v1997 = vpop.f32.mrb[0].mxu0
        %v1998 = vadd.f32 0.0, %v1997
        %v1999 = vpop.f32.mrb[0].mxu0
        %v2000 = vpop.f32.mrb[0].mxu0
        %v2001 = vadd.f32 0.0, %v2000
        %v2002 = vpop.f32.mrb[0].mxu0
        %2003 = vmatprep.mubr.bf16.mxu0 0
        %2004 = vmatmul.mubr.bf16.gmra.mrb[0].mxu0 %v1950
        %v2005 = vpop.f32.mrb[0].mxu0
        %v2006 = vadd.f32 0.0, %v2005
        %v2007 = vpop.f32.mrb[0].mxu0
        %v2008 = vpop.f32.mrb[0].mxu0
        %v2009 = vadd.f32 0.0, %v2008
        %v2010 = vpop.f32.mrb[0].mxu0
        %2011 = vmatprep.mubr.bf16.mxu0 0
        %2012 = vmatmul.mubr.bf16.gmra.mrb[0].mxu0 %v1953
        %v2013 = vpop.f32.mrb[0].mxu0
        %v2014 = vadd.f32 0.0, %v2013
        %v2015 = vpop.f32.mrb[0].mxu0
        %v2016 = vpop.f32.mrb[0].mxu0
        %v2017 = vadd.f32 0.0, %v2016
        %v2018 = vpop.f32.mrb[0].mxu0
        %2019 = vdwg.mxu0
        %v2020 = vadd.f32 %v1861, %v1990
        %v2021 = vadd.f32 %v1862, %v1993
        %v2022 = vadd.f32 %v1863, %v1998
        %v2023 = vadd.f32 %v1864, %v2001
        %v2024 = vadd.f32 %v1865, %v2006
        %v2025 = vadd.f32 %v1866, %v2009
        %v2026 = vadd.f32 %v1867, %v2014
        %v2027 = vadd.f32 %v1868, %v2017
        %v2044 = vrot.slane %v1888, 1
        %v2045 = vrot.slane %v1889, 1
        %v2046 = vsel %vm212, %v2044, %v2045
        %v2047 = vrot.slane %v1890, 1
        %v2048 = vrot.slane %v1891, 1
        %v2049 = vsel %vm212, %v2047, %v2048
        %v2050 = vrot.slane %v1892, 1
        %v2051 = vrot.slane %v1893, 1
        %v2052 = vsel %vm212, %v2050, %v2051
        %v2053 = vrot.slane %v1894, 1
        %v2054 = vrot.slane %v1895, 1
        %v2055 = vsel %vm212, %v2053, %v2054
        %v2056 = vrot.slane %v1896, 1
        %v2057 = vrot.slane %v1897, 1
        %v2058 = vsel %vm212, %v2056, %v2057
        %v2059 = vrot.slane %v1898, 1
        %v2060 = vrot.slane %v1899, 1
        %v2061 = vsel %vm212, %v2059, %v2060
        %v2062 = vrot.slane %v1900, 1
        %v2063 = vrot.slane %v1901, 1
        %v2064 = vsel %vm212, %v2062, %v2063
        %v2065 = vrot.slane %v1902, 1
        %v2066 = vrot.slane %v1903, 1
        %v2067 = vsel %vm212, %v2065, %v2066
        %v2076 = vpack.c.bf16 %v2049, %v2046
        %v2077 = vpack.c.bf16 %v2055, %v2052
        %v2078 = vpack.c.bf16 %v2061, %v2058
        %v2079 = vpack.c.bf16 %v2067, %v2064
        %s2080 = scalar_lea.vmem %s1, 416
        %v2081 = vld [vmem:[%s2080] sm:$0xf]
        %v2082 = vld [vmem:[%s2080 + $0x4] sm:$0xf]
        %v2083 = vld [vmem:[%s2080 + $0x8] sm:$0xf]
        %v2084 = vld [vmem:[%s2080 + $0xc] sm:$0xf]
        %v2085 = vld [vmem:[%s2080 + $0x10] sm:$0xf]
        %v2086 = vld [vmem:[%s2080 + $0x14] sm:$0xf]
        %v2087 = vld [vmem:[%s2080 + $0x18] sm:$0xf]
        %v2088 = vld [vmem:[%s2080 + $0x1c] sm:$0xf]
        %v2097 = vunpack.c.l.b16 %v2081
        %v2098 = vunpack.c.l.b16 %v2082
        %v2099 = vunpack.c.l.b16 %v2083
        %v2100 = vunpack.c.l.b16 %v2084
        %v2101 = vunpack.c.l.b16 %v2085
        %v2102 = vunpack.c.l.b16 %v2086
        %v2103 = vunpack.c.l.b16 %v2087
        %v2104 = vunpack.c.l.b16 %v2088
        %v2105 = vpack.c.b16 %v2098, %v2097
        %v2106 = vpack.c.b16 %v2100, %v2099
        %v2107 = vpack.c.b16 %v2102, %v2101
        %v2108 = vpack.c.b16 %v2104, %v2103
        %v2114 = vsel %vm282, %v2076, 0
        %v2117 = vsel %vm282, %v2077, 0
        %v2120 = vsel %vm282, %v2078, 0
        %v2123 = vsel %vm282, %v2079, 0
        %2125 = vmatprep.subr.bf16.mxu0 0
        %2126 = vmatpush1.bf16.msra.mxu0 %v2105
        %2127 = vmatprep.subr.bf16.mxu0 0
        %2128 = vmatpush1.bf16.msra.mxu0 %v2106
        %2129 = vmatprep.subr.bf16.mxu0 0
        %2130 = vmatpush1.bf16.msra.mxu0 %v2107
        %2131 = vmatprep.subr.bf16.mxu0 0
        %2132 = vmatpush1.bf16.msra.mxu0 %v2108
        %2133 = vmatprep.subr.bf16.mxu0 0
        %2134 = vmatpush1.bf16.msra.mxu0 0
        %2135 = vmatprep.subr.bf16.mxu0 0
        %2136 = vmatpush1.bf16.msra.mxu0 0
        %2137 = vmatprep.subr.bf16.mxu0 0
        %2138 = vmatpush1.bf16.msra.mxu0 0
        %2139 = vmatprep.subr.bf16.mxu0 0
        %2140 = vmatpush1.bf16.msra.mxu0 0
        %2141 = vmatprep.subr.bf16.mxu0 0
        %2142 = vmatpush1.bf16.msra.mxu0 0
        %2143 = vmatprep.subr.bf16.mxu0 0
        %2144 = vmatpush1.bf16.msra.mxu0 0
        %2145 = vmatprep.subr.bf16.mxu0 0
        %2146 = vmatpush1.bf16.msra.mxu0 0
        %2147 = vmatprep.subr.bf16.mxu0 0
        %2148 = vmatpush1.bf16.msra.mxu0 0
        %2149 = vmatprep.subr.bf16.mxu0 0
        %2150 = vmatpush1.bf16.msra.mxu0 0
        %2151 = vmatprep.subr.bf16.mxu0 0
        %2152 = vmatpush1.bf16.msra.mxu0 0
        %2153 = vmatprep.subr.bf16.mxu0 0
        %2154 = vmatpush1.bf16.msra.mxu0 0
        %2155 = vmatprep.subr.bf16.mxu0 0
        %2156 = vmatpush1.bf16.msra.mxu0 0
        %2157 = vmatprep.mubr.bf16.mxu0 0
        %2158 = vmatmul.mubr.bf16.gmra.mrb[0].mxu0 %v2114
        %v2159 = vpop.f32.mrb[0].mxu0
        %v2160 = vadd.f32 0.0, %v2159
        %v2161 = vpop.f32.mrb[0].mxu0
        %v2162 = vpop.f32.mrb[0].mxu0
        %v2163 = vadd.f32 0.0, %v2162
        %v2164 = vpop.f32.mrb[0].mxu0
        %2165 = vmatprep.mubr.bf16.mxu0 0
        %2166 = vmatmul.mubr.bf16.gmra.mrb[0].mxu0 %v2117
        %v2167 = vpop.f32.mrb[0].mxu0
        %v2168 = vadd.f32 0.0, %v2167
        %v2169 = vpop.f32.mrb[0].mxu0
        %v2170 = vpop.f32.mrb[0].mxu0
        %v2171 = vadd.f32 0.0, %v2170
        %v2172 = vpop.f32.mrb[0].mxu0
        %2173 = vmatprep.mubr.bf16.mxu0 0
        %2174 = vmatmul.mubr.bf16.gmra.mrb[0].mxu0 %v2120
        %v2175 = vpop.f32.mrb[0].mxu0
        %v2176 = vadd.f32 0.0, %v2175
        %v2177 = vpop.f32.mrb[0].mxu0
        %v2178 = vpop.f32.mrb[0].mxu0
        %v2179 = vadd.f32 0.0, %v2178
        %v2180 = vpop.f32.mrb[0].mxu0
        %2181 = vmatprep.mubr.bf16.mxu0 0
        %2182 = vmatmul.mubr.bf16.gmra.mrb[0].mxu0 %v2123
        %v2183 = vpop.f32.mrb[0].mxu0
        %v2184 = vadd.f32 0.0, %v2183
        %v2185 = vpop.f32.mrb[0].mxu0
        %v2186 = vpop.f32.mrb[0].mxu0
        %v2187 = vadd.f32 0.0, %v2186
        %v2188 = vpop.f32.mrb[0].mxu0
        %2189 = vdwg.mxu0
        %v2190 = vadd.f32 %v2020, %v2160
        %v2191 = vadd.f32 %v2021, %v2163
        %v2192 = vadd.f32 %v2022, %v2168
        %v2193 = vadd.f32 %v2023, %v2171
        %v2194 = vadd.f32 %v2024, %v2176
        %v2195 = vadd.f32 %v2025, %v2179
        %v2196 = vadd.f32 %v2026, %v2184
        %v2197 = vadd.f32 %v2027, %v2187
        %v2198 = vpack.c.bf16 %v1892, %v1890
        %v2199 = vpack.c.bf16 %v1896, %v1894
        %v2200 = vpack.c.bf16 %v1900, %v1898
        %v2201 = vpack.c.bf16 %v1904, %v1902
        %s2202 = scalar_lea.vmem %s1, 448
        %v2203 = vld [vmem:[%s2202] sm:$0xf]
        %v2204 = vld [vmem:[%s2202 + $0x4] sm:$0xf]
        %v2205 = vld [vmem:[%s2202 + $0x8] sm:$0xf]
        %v2206 = vld [vmem:[%s2202 + $0xc] sm:$0xf]
        %v2207 = vld [vmem:[%s2202 + $0x10] sm:$0xf]
        %v2208 = vld [vmem:[%s2202 + $0x14] sm:$0xf]
        %v2209 = vld [vmem:[%s2202 + $0x18] sm:$0xf]
        %v2210 = vld [vmem:[%s2202 + $0x1c] sm:$0xf]
        %v2219 = vunpack.c.l.b16 %v2203
        %v2220 = vunpack.c.l.b16 %v2204
        %v2221 = vunpack.c.l.b16 %v2205
        %v2222 = vunpack.c.l.b16 %v2206
        %v2223 = vunpack.c.l.b16 %v2207
        %v2224 = vunpack.c.l.b16 %v2208
        %v2225 = vunpack.c.l.b16 %v2209
        %v2226 = vunpack.c.l.b16 %v2210
        %v2227 = vpack.c.b16 %v2220, %v2219
        %v2228 = vpack.c.b16 %v2222, %v2221
        %v2229 = vpack.c.b16 %v2224, %v2223
        %v2230 = vpack.c.b16 %v2226, %v2225
        %v2236 = vsel %vm282, %v2198, 0
        %v2239 = vsel %vm282, %v2199, 0
        %v2242 = vsel %vm282, %v2200, 0
        %v2245 = vsel %vm282, %v2201, 0
        %2247 = vmatprep.subr.bf16.mxu0 0
        %2248 = vmatpush1.bf16.msra.mxu0 %v2227
        %2249 = vmatprep.subr.bf16.mxu0 0
        %2250 = vmatpush1.bf16.msra.mxu0 %v2228
        %2251 = vmatprep.subr.bf16.mxu0 0
        %2252 = vmatpush1.bf16.msra.mxu0 %v2229
        %2253 = vmatprep.subr.bf16.mxu0 0
        %2254 = vmatpush1.bf16.msra.mxu0 %v2230
        %2255 = vmatprep.subr.bf16.mxu0 0
        %2256 = vmatpush1.bf16.msra.mxu0 0
        %2257 = vmatprep.subr.bf16.mxu0 0
        %2258 = vmatpush1.bf16.msra.mxu0 0
        %2259 = vmatprep.subr.bf16.mxu0 0
        %2260 = vmatpush1.bf16.msra.mxu0 0
        %2261 = vmatprep.subr.bf16.mxu0 0
        %2262 = vmatpush1.bf16.msra.mxu0 0
        %2263 = vmatprep.subr.bf16.mxu0 0
        %2264 = vmatpush1.bf16.msra.mxu0 0
        %2265 = vmatprep.subr.bf16.mxu0 0
        %2266 = vmatpush1.bf16.msra.mxu0 0
        %2267 = vmatprep.subr.bf16.mxu0 0
        %2268 = vmatpush1.bf16.msra.mxu0 0
        %2269 = vmatprep.subr.bf16.mxu0 0
        %2270 = vmatpush1.bf16.msra.mxu0 0
        %2271 = vmatprep.subr.bf16.mxu0 0
        %2272 = vmatpush1.bf16.msra.mxu0 0
        %2273 = vmatprep.subr.bf16.mxu0 0
        %2274 = vmatpush1.bf16.msra.mxu0 0
        %2275 = vmatprep.subr.bf16.mxu0 0
        %2276 = vmatpush1.bf16.msra.mxu0 0
        %2277 = vmatprep.subr.bf16.mxu0 0
        %2278 = vmatpush1.bf16.msra.mxu0 0
        %2279 = vmatprep.mubr.bf16.mxu0 0
        %2280 = vmatmul.mubr.bf16.gmra.mrb[0].mxu0 %v2236
        %v2281 = vpop.f32.mrb[0].mxu0
        %v2282 = vadd.f32 0.0, %v2281
        %v2283 = vpop.f32.mrb[0].mxu0
        %v2284 = vpop.f32.mrb[0].mxu0
        %v2285 = vadd.f32 0.0, %v2284
        %v2286 = vpop.f32.mrb[0].mxu0
        %2287 = vmatprep.mubr.bf16.mxu0 0
        %2288 = vmatmul.mubr.bf16.gmra.mrb[0].mxu0 %v2239
        %v2289 = vpop.f32.mrb[0].mxu0
        %v2290 = vadd.f32 0.0, %v2289
        %v2291 = vpop.f32.mrb[0].mxu0
        %v2292 = vpop.f32.mrb[0].mxu0
        %v2293 = vadd.f32 0.0, %v2292
        %v2294 = vpop.f32.mrb[0].mxu0
        %2295 = vmatprep.mubr.bf16.mxu0 0
        %2296 = vmatmul.mubr.bf16.gmra.mrb[0].mxu0 %v2242
        %v2297 = vpop.f32.mrb[0].mxu0
        %v2298 = vadd.f32 0.0, %v2297
        %v2299 = vpop.f32.mrb[0].mxu0
        %v2300 = vpop.f32.mrb[0].mxu0
        %v2301 = vadd.f32 0.0, %v2300
        %v2302 = vpop.f32.mrb[0].mxu0
        %2303 = vmatprep.mubr.bf16.mxu0 0
        %2304 = vmatmul.mubr.bf16.gmra.mrb[0].mxu0 %v2245
        %v2305 = vpop.f32.mrb[0].mxu0
        %v2306 = vadd.f32 0.0, %v2305
        %v2307 = vpop.f32.mrb[0].mxu0
        %v2308 = vpop.f32.mrb[0].mxu0
        %v2309 = vadd.f32 0.0, %v2308
        %v2310 = vpop.f32.mrb[0].mxu0
        %2311 = vdwg.mxu0
        %v2312 = vadd.f32 %v2190, %v2282
        %v2313 = vadd.f32 %v2191, %v2285
        %v2314 = vadd.f32 %v2192, %v2290
        %v2315 = vadd.f32 %v2193, %v2293
        %v2316 = vadd.f32 %v2194, %v2298
        %v2317 = vadd.f32 %v2195, %v2301
        %v2318 = vadd.f32 %v2196, %v2306
        %v2319 = vadd.f32 %v2197, %v2309
        %v2322 = vrot.slane %v1904, 1
        %v2323 = vrot.slane %v1905, 1
        %v2324 = vsel %vm212, %v2322, %v2323
        %v2326 = vpack.c.bf16 %v2052, %v2049
        %v2327 = vpack.c.bf16 %v2058, %v2055
        %v2328 = vpack.c.bf16 %v2064, %v2061
        %v2329 = vpack.c.bf16 %v2324, %v2067
        %s2330 = scalar_lea.vmem %s1, 480
        %v2331 = vld [vmem:[%s2330] sm:$0xf]
        %v2332 = vld [vmem:[%s2330 + $0x4] sm:$0xf]
        %v2333 = vld [vmem:[%s2330 + $0x8] sm:$0xf]
        %v2334 = vld [vmem:[%s2330 + $0xc] sm:$0xf]
        %v2335 = vld [vmem:[%s2330 + $0x10] sm:$0xf]
        %v2336 = vld [vmem:[%s2330 + $0x14] sm:$0xf]
        %v2337 = vld [vmem:[%s2330 + $0x18] sm:$0xf]
        %v2338 = vld [vmem:[%s2330 + $0x1c] sm:$0xf]
        %v2347 = vunpack.c.l.b16 %v2331
        %v2348 = vunpack.c.l.b16 %v2332
        %v2349 = vunpack.c.l.b16 %v2333
        %v2350 = vunpack.c.l.b16 %v2334
        %v2351 = vunpack.c.l.b16 %v2335
        %v2352 = vunpack.c.l.b16 %v2336
        %v2353 = vunpack.c.l.b16 %v2337
        %v2354 = vunpack.c.l.b16 %v2338
        %v2355 = vpack.c.b16 %v2348, %v2347
        %v2356 = vpack.c.b16 %v2350, %v2349
        %v2357 = vpack.c.b16 %v2352, %v2351
        %v2358 = vpack.c.b16 %v2354, %v2353
        %v2364 = vsel %vm282, %v2326, 0
        %v2367 = vsel %vm282, %v2327, 0
        %v2370 = vsel %vm282, %v2328, 0
        %v2373 = vsel %vm282, %v2329, 0
        %2375 = vmatprep.subr.bf16.mxu0 0
        %2376 = vmatpush1.bf16.msra.mxu0 %v2355
        %2377 = vmatprep.subr.bf16.mxu0 0
        %2378 = vmatpush1.bf16.msra.mxu0 %v2356
        %2379 = vmatprep.subr.bf16.mxu0 0
        %2380 = vmatpush1.bf16.msra.mxu0 %v2357
        %2381 = vmatprep.subr.bf16.mxu0 0
        %2382 = vmatpush1.bf16.msra.mxu0 %v2358
        %2383 = vmatprep.subr.bf16.mxu0 0
        %2384 = vmatpush1.bf16.msra.mxu0 0
        %2385 = vmatprep.subr.bf16.mxu0 0
        %2386 = vmatpush1.bf16.msra.mxu0 0
        %2387 = vmatprep.subr.bf16.mxu0 0
        %2388 = vmatpush1.bf16.msra.mxu0 0
        %2389 = vmatprep.subr.bf16.mxu0 0
        %2390 = vmatpush1.bf16.msra.mxu0 0
        %2391 = vmatprep.subr.bf16.mxu0 0
        %2392 = vmatpush1.bf16.msra.mxu0 0
        %2393 = vmatprep.subr.bf16.mxu0 0
        %2394 = vmatpush1.bf16.msra.mxu0 0
        %2395 = vmatprep.subr.bf16.mxu0 0
        %2396 = vmatpush1.bf16.msra.mxu0 0
        %2397 = vmatprep.subr.bf16.mxu0 0
        %2398 = vmatpush1.bf16.msra.mxu0 0
        %2399 = vmatprep.subr.bf16.mxu0 0
        %2400 = vmatpush1.bf16.msra.mxu0 0
        %2401 = vmatprep.subr.bf16.mxu0 0
        %2402 = vmatpush1.bf16.msra.mxu0 0
        %2403 = vmatprep.subr.bf16.mxu0 0
        %2404 = vmatpush1.bf16.msra.mxu0 0
        %2405 = vmatprep.subr.bf16.mxu0 0
        %2406 = vmatpush1.bf16.msra.mxu0 0
        %2407 = vmatprep.mubr.bf16.mxu0 0
        %2408 = vmatmul.mubr.bf16.gmra.mrb[0].mxu0 %v2364
        %v2409 = vpop.f32.mrb[0].mxu0
        %v2410 = vadd.f32 0.0, %v2409
        %v2411 = vpop.f32.mrb[0].mxu0
        %v2412 = vpop.f32.mrb[0].mxu0
        %v2413 = vadd.f32 0.0, %v2412
        %v2414 = vpop.f32.mrb[0].mxu0
        %2415 = vmatprep.mubr.bf16.mxu0 0
        %2416 = vmatmul.mubr.bf16.gmra.mrb[0].mxu0 %v2367
        %v2417 = vpop.f32.mrb[0].mxu0
        %v2418 = vadd.f32 0.0, %v2417
        %v2419 = vpop.f32.mrb[0].mxu0
        %v2420 = vpop.f32.mrb[0].mxu0
        %v2421 = vadd.f32 0.0, %v2420
        %v2422 = vpop.f32.mrb[0].mxu0
        %2423 = vmatprep.mubr.bf16.mxu0 0
        %2424 = vmatmul.mubr.bf16.gmra.mrb[0].mxu0 %v2370
        %v2425 = vpop.f32.mrb[0].mxu0
        %v2426 = vadd.f32 0.0, %v2425
        %v2427 = vpop.f32.mrb[0].mxu0
        %v2428 = vpop.f32.mrb[0].mxu0
        %v2429 = vadd.f32 0.0, %v2428
        %v2430 = vpop.f32.mrb[0].mxu0
        %2431 = vmatprep.mubr.bf16.mxu0 0
        %2432 = vmatmul.mubr.bf16.gmra.mrb[0].mxu0 %v2373
        %v2433 = vpop.f32.mrb[0].mxu0
        %v2434 = vadd.f32 0.0, %v2433
        %v2435 = vpop.f32.mrb[0].mxu0
        %v2436 = vpop.f32.mrb[0].mxu0
        %v2437 = vadd.f32 0.0, %v2436
        %v2438 = vpop.f32.mrb[0].mxu0
        %2439 = vdwg.mxu0
        %v2440 = vadd.f32 %v2312, %v2410
        %v2441 = vadd.f32 %v2313, %v2413
        %v2442 = vadd.f32 %v2314, %v2418
        %v2443 = vadd.f32 %v2315, %v2421
        %v2444 = vadd.f32 %v2316, %v2426
        %v2445 = vadd.f32 %v2317, %v2429
        %v2446 = vadd.f32 %v2318, %v2434
        %v2447 = vadd.f32 %v2319, %v2437
        %2448 = vst [vmem:[%s139] sm:$0xff] %v2440
        %2449 = vst [vmem:[%s139 + $0x8] sm:$0xff] %v2441
        %2450 = vst [vmem:[%s139 + $0x10] sm:$0xff] %v2442
        %2451 = vst [vmem:[%s139 + $0x18] sm:$0xff] %v2443
        %2452 = vst [vmem:[%s139 + $0x20] sm:$0xff] %v2444
        %2453 = vst [vmem:[%s139 + $0x28] sm:$0xff] %v2445
        %2454 = vst [vmem:[%s139 + $0x30] sm:$0xff] %v2446
        %2455 = vst [vmem:[%s139 + $0x38] sm:$0xff] %v2447
        %s2456 = sand.u32 %s71, 1
        %s2457 = scalar_lea.sflag [#allocation3], %s2456
        %s2458 = sand.u32 %s71, 1
        %s2459 = smul.addr %s2458, 64
        %s2460 = scalar_lea.vmem [#allocation2], %s2459
        // Predicated region
        $region29: #{downsample.1} parent=27 // pred_check
          %p2461 = pneg %p81
        $region30: #{downsample.1} parent=27 // pred_check_branch
          %2463 = sbr.rel (%p2461) target = $region32
        $region31: #{downsample.1} parent=27 // pred_region
          %s2465 = ssub.s32 1024, 1024
          %2466 = vsyncadd %s2457, %s2465
          %s2467 = smul.addr %s16, 8
          %s2468 = smul.addr %s2467, 128
          %s2469 = scalar_lea.hbm %s2, %s2468
          %s2470 = sshll.u32 %s2460, 4
          %s2471 = int_to_ptr.vmem [resolvable:$true] %s2470
          %2476 = dma.vmem_to_hbm [thread:$0]  %s2471, 1024, %s2469, %s2457, 128, 128, 8
        $region32: #{downsample.1} parent=27 // pred_fallthru
          _
      $region28: #{downsample.1} parent=5 // pred_fallthru
        _
      %p2477 = scmp.le.s32.totalorder 2, %s11
      // Predicated region
      $region33: #{downsample.1} parent=5 // pred_check
        %p2478 = pneg %p2477
      $region34: #{downsample.1} parent=5 // pred_check_branch
        %2480 = sbr.rel (%p2478) target = $region36
      $region35: #{downsample.1} parent=5 // pred_region
        %s2481 = ssub.s32 %s11, 2
        // Predicated region
        $region37: #{downsample.1} parent=35 // pred_check
          %p2482 = pneg %p87
        $region38: #{downsample.1} parent=35 // pred_check_branch
          %2484 = sbr.rel (%p2482) target = $region40
        $region39: #{downsample.1} parent=35 // pred_region
          %s2485 = sand.u32 %s72, 1
          %s2486 = scalar_lea.sflag [#allocation3], %s2485
          %s2487 = sand.u32 %s72, 1
          %s2488 = smul.addr %s2487, 64
          %s2489 = scalar_lea.vmem [#allocation2], %s2488
          %2490 = dma.done %s2486, 1024
        $region40: #{downsample.1} parent=35 // pred_fallthru
          _
      $region36: #{downsample.1} parent=5 // pred_fallthru
        _
    $region6: #{downsample.1} parent=1 // loop_footer
      %s15 = sadd.s32 1, %s11
    $region7: #{downsample.1} parent=1 // loop_footer_branch
      %10 = sbr.rel target = $region3
    $region8: #{downsample.1} parent=1 // loop_exit
      _
    %2491 = vsyncpa [#allocation3], 1
    %s2492 = scalar_lea.sflag [#allocation3], 1
    %2493 = vsyncpa %s2492, 1

</llo_original>
